<compile_context>
chip_gen: v7x
topology: tpu7x:2x2x1
jax: 0.10.0
libtpu: 0.0.40
codegen_flags: <defaults>
</compile_context>

<pallas_src>
import functools

import jax
import jax.numpy as jnp
from jax.experimental import pallas as pl
from jax.experimental.pallas import tpu as pltpu

_INNER_MLP_MULT = 2          # _inner_mlp_mult in the PyTorch source
_BN_EPS = 1e-5               # PyTorch BatchNorm1d default eps


# ---------------------------------------------------------------------------
# The single fused ConvLayer kernel
# ---------------------------------------------------------------------------
def _conv_layer_kernel(feat_ref, gat_e_ref, gat_c_ref, w1_ref, w2_ref, bn_ref,
                       out_ref, *, E, C5, C6, h):
    CT = C5 + C6
    h2 = _INNER_MLP_MULT * h
    bf16 = jnp.bfloat16

    feat = feat_ref[...]                      # [E+CT, h]   f32
    edge = feat[0:E, :]                       # [E, h]
    cyc = feat[E:E + CT, :]                   # [CT, h]

    gat_e = gat_e_ref[...]                    # [4E+2CT, E]  bf16 (stacked 0/1)
    gat_c = gat_c_ref[...]                    # [2CT+2E, CT] bf16 (stacked 0/1)
    w1 = w1_ref[...]                          # [21h, h2]    bf16
    w2 = w2_ref[...]                          # [3h2+2h, h]  bf16
    bn = bn_ref[...]                          # [14, h2]     f32

    def mm(a, b):
        return jnp.dot(a, b, preferred_element_type=jnp.float32)

    def bn_relu(x, row, width):
        # Training-mode BatchNorm1d (fresh module, biased batch variance) + ReLU.
        # One-pass stats (mean, E[x^2]); rsqrt runs on the (otherwise idle) EUP.
        g = bn[row:row + 1, :width]
        b = bn[row + 1:row + 2, :width]
        inv_n = 1.0 / x.shape[0]
        mean = jnp.sum(x, axis=0, keepdims=True) * inv_n
        ex2 = jnp.sum(x * x, axis=0, keepdims=True) * inv_n
        scale = g * jax.lax.rsqrt(ex2 - mean * mean + _BN_EPS)
        shift = b - mean * scale
        return jnp.maximum(x * scale + shift, 0.0)

    def bn_relu_seg(x, row, width):
        # Same BN, but batch statistics computed separately for the 5-cycle rows
        # [0:C5] and the 6-cycle rows [C5:CT] (the PyTorch model calls cycle_mlp
        # once per cycle tensor, so stats must NOT be pooled across cycle sizes).
        g = bn[row:row + 1, :width]
        b = bn[row + 1:row + 2, :width]
        rid = jax.lax.broadcasted_iota(jnp.int32, (x.shape[0], 1), 0)
        m5 = (rid < C5).astype(jnp.float32)                  # [CT, 1]
        m6 = 1.0 - m5
        xx = x * x
        s_all = jnp.sum(x, axis=0, keepdims=True)
        q_all = jnp.sum(xx, axis=0, keepdims=True)
        s5 = jnp.sum(x * m5, axis=0, keepdims=True)
        q5 = jnp.sum(xx * m5, axis=0, keepdims=True)
        mean5 = s5 * (1.0 / C5)
        mean6 = (s_all - s5) * (1.0 / C6)
        var5 = q5 * (1.0 / C5) - mean5 * mean5
        var6 = (q_all - q5) * (1.0 / C6) - mean6 * mean6
        sc5 = g * jax.lax.rsqrt(var5 + _BN_EPS)
        sc6 = g * jax.lax.rsqrt(var6 + _BN_EPS)
        sh5 = b - mean5 * sc5
        sh6 = b - mean6 * sc6
        scale = m5 * sc5 + m6 * sc6
        shift = m5 * sh5 + m6 * sh6
        return jnp.maximum(x * scale + shift, 0.0)

    # TODO(synk): p.batched_subgraphlayer1b.gather_from_ptensors is a
    # data-dependent graph gather in the ptens C++ backend; it is approximated
    # here by fixed 0/1 row-mixing matrices preserving its channel-doubling
    # (order-1 -> order-1) semantics: gather(x) = concat([A @ x, B @ x], -1).

    edge_bf = edge.astype(bf16)

    # ---- hop-1 gathers: edge->edge AND edge->cycle(5&6) fused into ONE dot ----
    g1 = mm(gat_e[0:2 * E + 2 * CT, :], edge_bf)                       # [2E+2CT, h]
    e2e1 = jnp.concatenate([g1[0:E], g1[E:2 * E]], axis=1)             # [E, 2h]
    ec1 = jnp.concatenate([g1[2 * E:2 * E + CT],
                           g1[2 * E + CT:2 * E + 2 * CT]], axis=1)     # [CT, 2h]

    # ---- hop-2 edge->edge gather (one dot) ----
    g2 = mm(gat_e[2 * E + 2 * CT:, :], e2e1.astype(bf16))              # [2E, 2h]
    e2e2 = jnp.concatenate([g2[0:E], g2[E:2 * E]], axis=1)             # [E, 4h]

    # ---- Edge_edge.edge_mlp : Linear(5h->h2) BN ReLU Linear(h2->h) BN ReLU ----
    x_ee = jnp.concatenate([edge, e2e2], axis=1).astype(bf16)          # [E, 5h]
    hee = bn_relu(mm(x_ee, w1[0:5 * h, :]), 0, h2)
    edge_out_a = bn_relu(mm(hee.astype(bf16), w2[0:h2, :]), 6, h)      # [E, h]

    # ---- hop-2 cycle->cycle gather (5/6-cycles fused via block-diag, one dot) ----
    g3 = mm(gat_c[0:2 * CT, :], ec1.astype(bf16))                      # [2CT, 2h]
    ec2 = jnp.concatenate([g3[0:CT], g3[CT:2 * CT]], axis=1)           # [CT, 4h]
    cycle_news = jnp.concatenate([ec2, cyc], axis=1)                   # cat_channels -> [CT, 5h]
    cn_bf = cycle_news.astype(bf16)

    # ---- cycle->edge gather + reduce(+) over cycle sizes, fused into ONE dot ----
    g4 = mm(gat_c[2 * CT:, :], cn_bf)                                  # [2E, 5h]
    cycle2edge = jnp.concatenate([g4[0:E], g4[E:2 * E]], axis=1)       # [E, 10h]

    # ---- Edge_Cycle.edge_mlp (input 11h) ----
    x_ec = jnp.concatenate([edge, cycle2edge], axis=1).astype(bf16)    # [E, 11h]
    hec = bn_relu(mm(x_ec, w1[5 * h:16 * h, :]), 2, h2)
    edge_out_b = bn_relu(mm(hec.astype(bf16), w2[h2:2 * h2, :]), 8, h)

    # ---- Edge_Cycle.cycle_mlp, row-stacked, per-cycle-size BN statistics ----
    hcy = bn_relu_seg(mm(cn_bf, w1[16 * h:21 * h, :]), 4, h2)
    cyc_out = bn_relu_seg(mm(hcy.astype(bf16), w2[2 * h2:3 * h2, :]), 10, h)
    # TODO(synk): batched_subgraphlayer1b.like() only re-wraps the tensor; identity here.

    # ---- ConvLayer head: Linear(2h->h) BN ReLU over [edge_out_a | edge_out_b] ----
    x_h = jnp.concatenate([edge_out_a, edge_out_b], axis=1).astype(bf16)   # [E, 2h]
    edge_out = bn_relu(mm(x_h, w2[3 * h2:3 * h2 + 2 * h, :]), 12, h)

    # ---- packed, contiguous output (edge rows, then stacked cycle rows) ----
    out_ref[0:E, :] = edge_out
    out_ref[E:E + CT, :] = cyc_out


# ---------------------------------------------------------------------------
# Host-side packing helpers + wrapper
# ---------------------------------------------------------------------------
def _block_diag(a, b):
    z1 = jnp.zeros((a.shape[0], b.shape[1]), a.dtype)
    z2 = jnp.zeros((b.shape[0], a.shape[1]), a.dtype)
    top = jnp.concatenate([a, z1], axis=1)
    bot = jnp.concatenate([z2, b], axis=1)
    return jnp.concatenate([top, bot], axis=0)


def _pad_lanes(v, width):
    v = v.reshape(1, -1).astype(jnp.float32)
    if v.shape[1] < width:
        v = jnp.concatenate([v, jnp.zeros((1, width - v.shape[1]), jnp.float32)],
                            axis=1)
    return v


def _cost_estimate(E, C5, C6, h, inputs):
    CT = C5 + C6
    h2 = _INNER_MLP_MULT * h
    mm = [
        (2 * E + 2 * CT, E, h),          # hop-1 gathers (edge->edge + edge->cycle)
        (2 * E, E, 2 * h),               # hop-2 edge->edge
        (2 * CT, CT, 2 * h),             # hop-2 cycle->cycle
        (2 * E, CT, 5 * h),              # cycle->edge (+sum)
        (E, 5 * h, h2), (E, h2, h),      # edge2edge mlp
        (E, 11 * h, h2), (E, h2, h),     # edge_cycle edge mlp
        (CT, 5 * h, h2), (CT, h2, h),    # cycle mlp
        (E, 2 * h, h),                   # head mlp
    ]
    flops = sum(2 * m * k * n for m, k, n in mm)
    transcendentals = 4 * (h2 + h) + h   # rsqrt per BN channel (incl. segmented)
    bytes_accessed = (sum(int(x.size) * x.dtype.itemsize for x in inputs)
                      + (E + CT) * h * 4)
    return pl.CostEstimate(flops=flops, transcendentals=transcendentals,
                           bytes_accessed=bytes_accessed)


def conv_layer_forward(params, graph, edge_rep, cycle_reps):
    """Full ConvLayer.forward as a single fused Pallas call."""
    E, h = edge_rep.shape
    C5 = cycle_reps[0].shape[0]
    C6 = cycle_reps[1].shape[0]
    CT = C5 + C6
    h2 = _INNER_MLP_MULT * h
    bf16 = jnp.bfloat16

    # ---- host-side packing (layout plumbing only; no compute hoisted) ----
    feat = jnp.concatenate([edge_rep, cycle_reps[0], cycle_reps[1]],
                           axis=0).astype(jnp.float32)                  # [E+CT, h]

    (A_ee1, B_ee1) = graph["edge_edge_a"]
    (A_ee2, B_ee2) = graph["edge_edge_b"]
    (A_ec5, B_ec5) = graph["edge_cycle"][0]
    (A_ec6, B_ec6) = graph["edge_cycle"][1]
    (A_cc5, B_cc5) = graph["cycle_cycle"][0]
    (A_cc6, B_cc6) = graph["cycle_cycle"][1]
    (A_ce5, B_ce5) = graph["cycle_edge"][0]
    (A_ce6, B_ce6) = graph["cycle_edge"][1]

    # gathers with contraction dim = E rows
    gat_e = jnp.concatenate(
        [A_ee1, B_ee1,             # hop-1 edge->edge       (rows 0 : 2E)
         A_ec5, A_ec6,             # hop-1 edge->cycle, A   (rows 2E : 2E+CT)
         B_ec5, B_ec6,             # hop-1 edge->cycle, B   (rows 2E+CT : 2E+2CT)
         A_ee2, B_ee2],            # hop-2 edge->edge       (rows 2E+2CT : 4E+2CT)
        axis=0).astype(bf16)                                            # [4E+2CT, E]

    # gathers with contraction dim = CT cycle rows
    gat_c = jnp.concatenate(
        [_block_diag(A_cc5, A_cc6),                  # hop-2 cycle->cycle, A
         _block_diag(B_cc5, B_cc6),                  # hop-2 cycle->cycle, B
         jnp.concatenate([A_ce5, A_ce6], axis=1),    # cycle->edge, A (sum fused)
         jnp.concatenate([B_ce5, B_ce6], axis=1)],   # cycle->edge, B (sum fused)
        axis=0).astype(bf16)                                            # [2CT+2E, CT]

    p_ee = params["edge2edge"]["edge_mlp"]
    p_ec = params["edge_cycle"]["edge_mlp"]
    p_cy = params["edge_cycle"]["cycle_mlp"]
    p_hd = params["mlp"]

    w1_slab = jnp.concatenate([p_ee["w1"], p_ec["w1"], p_cy["w1"]],
                              axis=0).astype(bf16)                      # [21h, h2]
    w2_slab = jnp.concatenate([p_ee["w2"], p_ec["w2"], p_cy["w2"], p_hd["w"]],
                              axis=0).astype(bf16)                      # [3h2+2h, h]
    bn_slab = jnp.concatenate(
        [_pad_lanes(v, h2) for v in
         (p_ee["g1"], p_ee["b1"], p_ec["g1"], p_ec["b1"], p_cy["g1"], p_cy["b1"],
          p_ee["g2"], p_ee["b2"], p_ec["g2"], p_ec["b2"], p_cy["g2"], p_cy["b2"],
          p_hd["g"], p_hd["b"])],
        axis=0)                                                         # [14, h2] f32

    inputs = (feat, gat_e, gat_c, w1_slab, w2_slab, bn_slab)

    kernel = functools.partial(_conv_layer_kernel, E=E, C5=C5, C6=C6, h=h)

    packed = pl.pallas_call(
        kernel,
        out_shape=jax.ShapeDtypeStruct((E + CT, h), jnp.float32),
        in_specs=[pl.BlockSpec(memory_space=pltpu.MemorySpace.VMEM)] * len(inputs),
        out_specs=pl.BlockSpec(memory_space=pltpu.MemorySpace.VMEM),
        cost_estimate=_cost_estimate(E, C5, C6, h, inputs),
    )(*inputs)

    edge_out = packed[0:E]
    cycle_outs = [packed[E:E + C5], packed[E + C5:E + CT]]
    return edge_out, cycle_outs


# ---------------------------------------------------------------------------
# Deterministic parameter / graph construction
# ---------------------------------------------------------------------------
def init_mlp2(key, d_in, hidden_dim):
    d_mid = hidden_dim * _INNER_MLP_MULT
    k1, k2 = jax.random.split(key)
    return {
        "w1": jax.random.normal(k1, (d_in, d_mid), jnp.float32) * 0.1,
        "g1": jnp.ones((1, d_mid), jnp.float32),       # BatchNorm1d default weight
        "b1": jnp.zeros((1, d_mid), jnp.float32),      # BatchNorm1d default bias
        "w2": jax.random.normal(k2, (d_mid, hidden_dim), jnp.float32) * 0.1,
        "g2": jnp.ones((1, hidden_dim), jnp.float32),
        "b2": jnp.zeros((1, hidden_dim), jnp.float32),
    }


def make_gather_mats(key, n_out, n_in):
    ka, kb = jax.random.split(key)
    m_a = (jax.random.uniform(ka, (n_out, n_in)) < 0.3).astype(jnp.float32)
    m_b = (jax.random.uniform(kb, (n_out, n_in)) < 0.3).astype(jnp.float32)
    return m_a, m_b


if __name__ == "__main__":
    hidden_dim = 32
    E, C5, C6 = 16, 10, 12      # edge rows, 5-cycle rows, 6-cycle rows

    key = jax.random.PRNGKey(0)
    keys = jax.random.split(key, 16)

    edge_rep = jax.random.normal(keys[0], (E, hidden_dim), jnp.float32)
    cycle_reps = [
        jax.random.normal(keys[1], (C5, hidden_dim), jnp.float32),
        jax.random.normal(keys[2], (C6, hidden_dim), jnp.float32),
    ]

    graph = {
        "edge_edge_a": make_gather_mats(keys[3], E, E),
        "edge_edge_b": make_gather_mats(keys[4], E, E),
        "edge_cycle": [make_gather_mats(keys[5], C5, E), make_gather_mats(keys[6], C6, E)],
        "cycle_cycle": [make_gather_mats(keys[7], C5, C5), make_gather_mats(keys[8], C6, C6)],
        "cycle_edge": [make_gather_mats(keys[9], E, C5), make_gather_mats(keys[10], E, C6)],
    }

    params = {
        "edge2edge": {"edge_mlp": init_mlp2(keys[11], 5 * hidden_dim, hidden_dim)},
        "edge_cycle": {
            "edge_mlp": init_mlp2(keys[12], 11 * hidden_dim, hidden_dim),
            "cycle_mlp": init_mlp2(keys[13], 5 * hidden_dim, hidden_dim),
        },
        "mlp": {
            "w": jax.random.normal(keys[14], (2 * hidden_dim, hidden_dim), jnp.float32) * 0.1,
            "g": jnp.ones((1, hidden_dim), jnp.float32),
            "b": jnp.zeros((1, hidden_dim), jnp.float32),
        },
    }

    fwd = jax.jit(conv_layer_forward)
    edge_out, cycle_outs = fwd(params, graph, edge_rep, cycle_reps)
    jax.block_until_ready(edge_out)
    for c in cycle_outs:
        jax.block_until_ready(c)

    assert edge_out.shape == (E, hidden_dim)
    assert cycle_outs[0].shape == (C5, hidden_dim)
    assert cycle_outs[1].shape == (C6, hidden_dim)
    assert bool(jnp.all(jnp.isfinite(edge_out)))
    assert bool(jnp.all(jnp.isfinite(cycle_outs[0])))
    assert bool(jnp.all(jnp.isfinite(cycle_outs[1])))
    print("KERNEL_OK")
</pallas_src>

<mosaic_0001>
module attributes {stable_mosaic.version = 11 : i64} {
  func.func @_conv_layer_kernel(%arg0: memref<38x32xf32, #tpu.memory_space<vmem>>, %arg1: memref<108x16xbf16, #tpu.memory_space<vmem>>, %arg2: memref<76x22xbf16, #tpu.memory_space<vmem>>, %arg3: memref<672x64xbf16, #tpu.memory_space<vmem>>, %arg4: memref<256x32xbf16, #tpu.memory_space<vmem>>, %arg5: memref<14x64xf32, #tpu.memory_space<vmem>>, %arg6: memref<38x32xf32, #tpu.memory_space<vmem>>) attributes {dimension_semantics = [], scalar_prefetch = 0 : i64, scratch_operands = 0 : i64, tpu.core_type = #tpu.core_type<tc>} {
    %c0 = arith.constant 0 : index
    %c0_0 = arith.constant 0 : index
    %0 = vector.load %arg0[%c0, %c0_0] : memref<38x32xf32, #tpu.memory_space<vmem>>, vector<38x32xf32>
    %1 = vector.extract_strided_slice %0 {offsets = [0, 0], sizes = [16, 32], strides = [1, 1]} : vector<38x32xf32> to vector<16x32xf32>
    %2 = vector.extract_strided_slice %0 {offsets = [16, 0], sizes = [22, 32], strides = [1, 1]} : vector<38x32xf32> to vector<22x32xf32>
    %c0_1 = arith.constant 0 : index
    %c0_2 = arith.constant 0 : index
    %3 = vector.load %arg1[%c0_1, %c0_2] : memref<108x16xbf16, #tpu.memory_space<vmem>>, vector<108x16xbf16>
    %c0_3 = arith.constant 0 : index
    %c0_4 = arith.constant 0 : index
    %4 = vector.load %arg2[%c0_3, %c0_4] : memref<76x22xbf16, #tpu.memory_space<vmem>>, vector<76x22xbf16>
    %c0_5 = arith.constant 0 : index
    %c0_6 = arith.constant 0 : index
    %5 = vector.load %arg3[%c0_5, %c0_6] : memref<672x64xbf16, #tpu.memory_space<vmem>>, vector<672x64xbf16>
    %c0_7 = arith.constant 0 : index
    %c0_8 = arith.constant 0 : index
    %6 = vector.load %arg4[%c0_7, %c0_8] : memref<256x32xbf16, #tpu.memory_space<vmem>>, vector<256x32xbf16>
    %c0_9 = arith.constant 0 : index
    %c0_10 = arith.constant 0 : index
    %7 = vector.load %arg5[%c0_9, %c0_10] : memref<14x64xf32, #tpu.memory_space<vmem>>, vector<14x64xf32>
    %8 = arith.truncf %1 : vector<16x32xf32> to vector<16x32xbf16>
    %9 = vector.extract_strided_slice %3 {offsets = [0, 0], sizes = [76, 16], strides = [1, 1]} : vector<108x16xbf16> to vector<76x16xbf16>
    %cst = arith.constant dense<0.000000e+00> : vector<76x32xf32>
    %10 = tpu.matmul %9, %8, %cst {dimension_numbers = #tpu.dot_dimension_numbers<[1], [0], [0], [1], [0, 0, 1, 1], [], []>} : vector<76x16xbf16>, vector<16x32xbf16>, vector<76x32xf32> -> vector<76x32xf32>
    %11 = vector.extract_strided_slice %10 {offsets = [0, 0], sizes = [16, 32], strides = [1, 1]} : vector<76x32xf32> to vector<16x32xf32>
    %12 = vector.extract_strided_slice %10 {offsets = [16, 0], sizes = [16, 32], strides = [1, 1]} : vector<76x32xf32> to vector<16x32xf32>
    %13 = tpu.concatenate %11, %12 in 1 : vector<16x32xf32>, vector<16x32xf32> -> vector<16x64xf32>
    %14 = vector.extract_strided_slice %10 {offsets = [32, 0], sizes = [22, 32], strides = [1, 1]} : vector<76x32xf32> to vector<22x32xf32>
    %15 = vector.extract_strided_slice %10 {offsets = [54, 0], sizes = [22, 32], strides = [1, 1]} : vector<76x32xf32> to vector<22x32xf32>
    %16 = tpu.concatenate %14, %15 in 1 : vector<22x32xf32>, vector<22x32xf32> -> vector<22x64xf32>
    %17 = vector.extract_strided_slice %3 {offsets = [76, 0], sizes = [32, 16], strides = [1, 1]} : vector<108x16xbf16> to vector<32x16xbf16>
    %18 = arith.truncf %13 : vector<16x64xf32> to vector<16x64xbf16>
    %cst_11 = arith.constant dense<0.000000e+00> : vector<32x64xf32>
    %19 = tpu.matmul %17, %18, %cst_11 {dimension_numbers = #tpu.dot_dimension_numbers<[1], [0], [0], [1], [0, 0, 1, 1], [], []>} : vector<32x16xbf16>, vector<16x64xbf16>, vector<32x64xf32> -> vector<32x64xf32>
    %20 = vector.extract_strided_slice %19 {offsets = [0, 0], sizes = [16, 64], strides = [1, 1]} : vector<32x64xf32> to vector<16x64xf32>
    %21 = vector.extract_strided_slice %19 {offsets = [16, 0], sizes = [16, 64], strides = [1, 1]} : vector<32x64xf32> to vector<16x64xf32>
    %22 = tpu.concatenate %20, %21 in 1 : vector<16x64xf32>, vector<16x64xf32> -> vector<16x128xf32>
    %23 = tpu.concatenate %1, %22 in 1 : vector<16x32xf32>, vector<16x128xf32> -> vector<16x160xf32>
    %24 = arith.truncf %23 : vector<16x160xf32> to vector<16x160xbf16>
    %25 = vector.extract_strided_slice %5 {offsets = [0, 0], sizes = [160, 64], strides = [1, 1]} : vector<672x64xbf16> to vector<160x64xbf16>
    %cst_12 = arith.constant dense<0.000000e+00> : vector<16x64xf32>
    %26 = tpu.matmul %24, %25, %cst_12 {dimension_numbers = #tpu.dot_dimension_numbers<[1], [0], [0], [1], [0, 0, 1, 1], [], []>} : vector<16x160xbf16>, vector<160x64xbf16>, vector<16x64xf32> -> vector<16x64xf32>
    %27 = vector.extract_strided_slice %7 {offsets = [0, 0], sizes = [1, 64], strides = [1, 1]} : vector<14x64xf32> to vector<1x64xf32>
    %28 = vector.extract_strided_slice %7 {offsets = [1, 0], sizes = [1, 64], strides = [1, 1]} : vector<14x64xf32> to vector<1x64xf32>
    %cst_13 = arith.constant dense<0.000000e+00> : vector<64xf32>
    %29 = vector.multi_reduction <add>, %26, %cst_13 [0] : vector<16x64xf32> to vector<64xf32>
    %30 = vector.shape_cast %29 : vector<64xf32> to vector<1x64xf32>
    %cst_14 = arith.constant 6.250000e-02 : f32
    %31 = vector.broadcast %cst_14 : f32 to vector<1x64xf32>
    %32 = arith.mulf %30, %31 : vector<1x64xf32>
    %33 = arith.mulf %26, %26 : vector<16x64xf32>
    %cst_15 = arith.constant dense<0.000000e+00> : vector<64xf32>
    %34 = vector.multi_reduction <add>, %33, %cst_15 [0] : vector<16x64xf32> to vector<64xf32>
    %35 = vector.shape_cast %34 : vector<64xf32> to vector<1x64xf32>
    %cst_16 = arith.constant 6.250000e-02 : f32
    %36 = vector.broadcast %cst_16 : f32 to vector<1x64xf32>
    %37 = arith.mulf %35, %36 : vector<1x64xf32>
    %38 = arith.mulf %32, %32 : vector<1x64xf32>
    %39 = arith.subf %37, %38 : vector<1x64xf32>
    %cst_17 = arith.constant 9.99999974E-6 : f32
    %40 = vector.broadcast %cst_17 : f32 to vector<1x64xf32>
    %41 = arith.addf %39, %40 : vector<1x64xf32>
    %42 = math.rsqrt %41 : vector<1x64xf32>
    %43 = arith.mulf %27, %42 : vector<1x64xf32>
    %44 = arith.mulf %32, %43 : vector<1x64xf32>
    %45 = arith.subf %28, %44 : vector<1x64xf32>
    %46 = vector.broadcast %43 : vector<1x64xf32> to vector<16x64xf32>
    %47 = arith.mulf %26, %46 : vector<16x64xf32>
    %48 = vector.broadcast %45 : vector<1x64xf32> to vector<16x64xf32>
    %49 = arith.addf %47, %48 : vector<16x64xf32>
    %cst_18 = arith.constant 0.000000e+00 : f32
    %50 = vector.broadcast %cst_18 : f32 to vector<16x64xf32>
    %51 = arith.maximumf %49, %50 : vector<16x64xf32>
    %52 = arith.truncf %51 : vector<16x64xf32> to vector<16x64xbf16>
    %53 = vector.extract_strided_slice %6 {offsets = [0, 0], sizes = [64, 32], strides = [1, 1]} : vector<256x32xbf16> to vector<64x32xbf16>
    %cst_19 = arith.constant dense<0.000000e+00> : vector<16x32xf32>
    %54 = tpu.matmul %52, %53, %cst_19 {dimension_numbers = #tpu.dot_dimension_numbers<[1], [0], [0], [1], [0, 0, 1, 1], [], []>} : vector<16x64xbf16>, vector<64x32xbf16>, vector<16x32xf32> -> vector<16x32xf32>
    %55 = vector.extract_strided_slice %7 {offsets = [6, 0], sizes = [1, 32], strides = [1, 1]} : vector<14x64xf32> to vector<1x32xf32>
    %56 = vector.extract_strided_slice %7 {offsets = [7, 0], sizes = [1, 32], strides = [1, 1]} : vector<14x64xf32> to vector<1x32xf32>
    %cst_20 = arith.constant dense<0.000000e+00> : vector<32xf32>
    %57 = vector.multi_reduction <add>, %54, %cst_20 [0] : vector<16x32xf32> to vector<32xf32>
    %58 = vector.shape_cast %57 : vector<32xf32> to vector<1x32xf32>
    %cst_21 = arith.constant 6.250000e-02 : f32
    %59 = vector.broadcast %cst_21 : f32 to vector<1x32xf32>
    %60 = arith.mulf %58, %59 : vector<1x32xf32>
    %61 = arith.mulf %54, %54 : vector<16x32xf32>
    %cst_22 = arith.constant dense<0.000000e+00> : vector<32xf32>
    %62 = vector.multi_reduction <add>, %61, %cst_22 [0] : vector<16x32xf32> to vector<32xf32>
    %63 = vector.shape_cast %62 : vector<32xf32> to vector<1x32xf32>
    %cst_23 = arith.constant 6.250000e-02 : f32
    %64 = vector.broadcast %cst_23 : f32 to vector<1x32xf32>
    %65 = arith.mulf %63, %64 : vector<1x32xf32>
    %66 = arith.mulf %60, %60 : vector<1x32xf32>
    %67 = arith.subf %65, %66 : vector<1x32xf32>
    %cst_24 = arith.constant 9.99999974E-6 : f32
    %68 = vector.broadcast %cst_24 : f32 to vector<1x32xf32>
    %69 = arith.addf %67, %68 : vector<1x32xf32>
    %70 = math.rsqrt %69 : vector<1x32xf32>
    %71 = arith.mulf %55, %70 : vector<1x32xf32>
    %72 = arith.mulf %60, %71 : vector<1x32xf32>
    %73 = arith.subf %56, %72 : vector<1x32xf32>
    %74 = vector.broadcast %71 : vector<1x32xf32> to vector<16x32xf32>
    %75 = arith.mulf %54, %74 : vector<16x32xf32>
    %76 = vector.broadcast %73 : vector<1x32xf32> to vector<16x32xf32>
    %77 = arith.addf %75, %76 : vector<16x32xf32>
    %cst_25 = arith.constant 0.000000e+00 : f32
    %78 = vector.broadcast %cst_25 : f32 to vector<16x32xf32>
    %79 = arith.maximumf %77, %78 : vector<16x32xf32>
    %80 = vector.extract_strided_slice %4 {offsets = [0, 0], sizes = [44, 22], strides = [1, 1]} : vector<76x22xbf16> to vector<44x22xbf16>
    %81 = arith.truncf %16 : vector<22x64xf32> to vector<22x64xbf16>
    %cst_26 = arith.constant dense<0.000000e+00> : vector<44x64xf32>
    %82 = tpu.matmul %80, %81, %cst_26 {dimension_numbers = #tpu.dot_dimension_numbers<[1], [0], [0], [1], [0, 0, 1, 1], [], []>} : vector<44x22xbf16>, vector<22x64xbf16>, vector<44x64xf32> -> vector<44x64xf32>
    %83 = vector.extract_strided_slice %82 {offsets = [0, 0], sizes = [22, 64], strides = [1, 1]} : vector<44x64xf32> to vector<22x64xf32>
    %84 = vector.extract_strided_slice %82 {offsets = [22, 0], sizes = [22, 64], strides = [1, 1]} : vector<44x64xf32> to vector<22x64xf32>
    %85 = tpu.concatenate %83, %84 in 1 : vector<22x64xf32>, vector<22x64xf32> -> vector<22x128xf32>
    %86 = tpu.concatenate %85, %2 in 1 : vector<22x128xf32>, vector<22x32xf32> -> vector<22x160xf32>
    %87 = arith.truncf %86 : vector<22x160xf32> to vector<22x160xbf16>
    %88 = vector.extract_strided_slice %4 {offsets = [44, 0], sizes = [32, 22], strides = [1, 1]} : vector<76x22xbf16> to vector<32x22xbf16>
    %cst_27 = arith.constant dense<0.000000e+00> : vector<32x160xf32>
    %89 = tpu.matmul %88, %87, %cst_27 {dimension_numbers = #tpu.dot_dimension_numbers<[1], [0], [0], [1], [0, 0, 1, 1], [], []>} : vector<32x22xbf16>, vector<22x160xbf16>, vector<32x160xf32> -> vector<32x160xf32>
    %90 = vector.extract_strided_slice %89 {offsets = [0, 0], sizes = [16, 160], strides = [1, 1]} : vector<32x160xf32> to vector<16x160xf32>
    %91 = vector.extract_strided_slice %89 {offsets = [16, 0], sizes = [16, 160], strides = [1, 1]} : vector<32x160xf32> to vector<16x160xf32>
    %92 = tpu.concatenate %90, %91 in 1 : vector<16x160xf32>, vector<16x160xf32> -> vector<16x320xf32>
    %93 = tpu.concatenate %1, %92 in 1 : vector<16x32xf32>, vector<16x320xf32> -> vector<16x352xf32>
    %94 = arith.truncf %93 : vector<16x352xf32> to vector<16x352xbf16>
    %95 = vector.extract_strided_slice %5 {offsets = [160, 0], sizes = [352, 64], strides = [1, 1]} : vector<672x64xbf16> to vector<352x64xbf16>
    %cst_28 = arith.constant dense<0.000000e+00> : vector<16x64xf32>
    %96 = tpu.matmul %94, %95, %cst_28 {dimension_numbers = #tpu.dot_dimension_numbers<[1], [0], [0], [1], [0, 0, 1, 1], [], []>} : vector<16x352xbf16>, vector<352x64xbf16>, vector<16x64xf32> -> vector<16x64xf32>
    %97 = vector.extract_strided_slice %7 {offsets = [2, 0], sizes = [1, 64], strides = [1, 1]} : vector<14x64xf32> to vector<1x64xf32>
    %98 = vector.extract_strided_slice %7 {offsets = [3, 0], sizes = [1, 64], strides = [1, 1]} : vector<14x64xf32> to vector<1x64xf32>
    %cst_29 = arith.constant dense<0.000000e+00> : vector<64xf32>
    %99 = vector.multi_reduction <add>, %96, %cst_29 [0] : vector<16x64xf32> to vector<64xf32>
    %100 = vector.shape_cast %99 : vector<64xf32> to vector<1x64xf32>
    %cst_30 = arith.constant 6.250000e-02 : f32
    %101 = vector.broadcast %cst_30 : f32 to vector<1x64xf32>
    %102 = arith.mulf %100, %101 : vector<1x64xf32>
    %103 = arith.mulf %96, %96 : vector<16x64xf32>
    %cst_31 = arith.constant dense<0.000000e+00> : vector<64xf32>
    %104 = vector.multi_reduction <add>, %103, %cst_31 [0] : vector<16x64xf32> to vector<64xf32>
    %105 = vector.shape_cast %104 : vector<64xf32> to vector<1x64xf32>
    %cst_32 = arith.constant 6.250000e-02 : f32
    %106 = vector.broadcast %cst_32 : f32 to vector<1x64xf32>
    %107 = arith.mulf %105, %106 : vector<1x64xf32>
    %108 = arith.mulf %102, %102 : vector<1x64xf32>
    %109 = arith.subf %107, %108 : vector<1x64xf32>
    %cst_33 = arith.constant 9.99999974E-6 : f32
    %110 = vector.broadcast %cst_33 : f32 to vector<1x64xf32>
    %111 = arith.addf %109, %110 : vector<1x64xf32>
    %112 = math.rsqrt %111 : vector<1x64xf32>
    %113 = arith.mulf %97, %112 : vector<1x64xf32>
    %114 = arith.mulf %102, %113 : vector<1x64xf32>
    %115 = arith.subf %98, %114 : vector<1x64xf32>
    %116 = vector.broadcast %113 : vector<1x64xf32> to vector<16x64xf32>
    %117 = arith.mulf %96, %116 : vector<16x64xf32>
    %118 = vector.broadcast %115 : vector<1x64xf32> to vector<16x64xf32>
    %119 = arith.addf %117, %118 : vector<16x64xf32>
    %cst_34 = arith.constant 0.000000e+00 : f32
    %120 = vector.broadcast %cst_34 : f32 to vector<16x64xf32>
    %121 = arith.maximumf %119, %120 : vector<16x64xf32>
    %122 = arith.truncf %121 : vector<16x64xf32> to vector<16x64xbf16>
    %123 = vector.extract_strided_slice %6 {offsets = [64, 0], sizes = [64, 32], strides = [1, 1]} : vector<256x32xbf16> to vector<64x32xbf16>
    %cst_35 = arith.constant dense<0.000000e+00> : vector<16x32xf32>
    %124 = tpu.matmul %122, %123, %cst_35 {dimension_numbers = #tpu.dot_dimension_numbers<[1], [0], [0], [1], [0, 0, 1, 1], [], []>} : vector<16x64xbf16>, vector<64x32xbf16>, vector<16x32xf32> -> vector<16x32xf32>
    %125 = vector.extract_strided_slice %7 {offsets = [8, 0], sizes = [1, 32], strides = [1, 1]} : vector<14x64xf32> to vector<1x32xf32>
    %126 = vector.extract_strided_slice %7 {offsets = [9, 0], sizes = [1, 32], strides = [1, 1]} : vector<14x64xf32> to vector<1x32xf32>
    %cst_36 = arith.constant dense<0.000000e+00> : vector<32xf32>
    %127 = vector.multi_reduction <add>, %124, %cst_36 [0] : vector<16x32xf32> to vector<32xf32>
    %128 = vector.shape_cast %127 : vector<32xf32> to vector<1x32xf32>
    %cst_37 = arith.constant 6.250000e-02 : f32
    %129 = vector.broadcast %cst_37 : f32 to vector<1x32xf32>
    %130 = arith.mulf %128, %129 : vector<1x32xf32>
    %131 = arith.mulf %124, %124 : vector<16x32xf32>
    %cst_38 = arith.constant dense<0.000000e+00> : vector<32xf32>
    %132 = vector.multi_reduction <add>, %131, %cst_38 [0] : vector<16x32xf32> to vector<32xf32>
    %133 = vector.shape_cast %132 : vector<32xf32> to vector<1x32xf32>
    %cst_39 = arith.constant 6.250000e-02 : f32
    %134 = vector.broadcast %cst_39 : f32 to vector<1x32xf32>
    %135 = arith.mulf %133, %134 : vector<1x32xf32>
    %136 = arith.mulf %130, %130 : vector<1x32xf32>
    %137 = arith.subf %135, %136 : vector<1x32xf32>
    %cst_40 = arith.constant 9.99999974E-6 : f32
    %138 = vector.broadcast %cst_40 : f32 to vector<1x32xf32>
    %139 = arith.addf %137, %138 : vector<1x32xf32>
    %140 = math.rsqrt %139 : vector<1x32xf32>
    %141 = arith.mulf %125, %140 : vector<1x32xf32>
    %142 = arith.mulf %130, %141 : vector<1x32xf32>
    %143 = arith.subf %126, %142 : vector<1x32xf32>
    %144 = vector.broadcast %141 : vector<1x32xf32> to vector<16x32xf32>
    %145 = arith.mulf %124, %144 : vector<16x32xf32>
    %146 = vector.broadcast %143 : vector<1x32xf32> to vector<16x32xf32>
    %147 = arith.addf %145, %146 : vector<16x32xf32>
    %cst_41 = arith.constant 0.000000e+00 : f32
    %148 = vector.broadcast %cst_41 : f32 to vector<16x32xf32>
    %149 = arith.maximumf %147, %148 : vector<16x32xf32>
    %150 = vector.extract_strided_slice %5 {offsets = [512, 0], sizes = [160, 64], strides = [1, 1]} : vector<672x64xbf16> to vector<160x64xbf16>
    %cst_42 = arith.constant dense<0.000000e+00> : vector<22x64xf32>
    %151 = tpu.matmul %87, %150, %cst_42 {dimension_numbers = #tpu.dot_dimension_numbers<[1], [0], [0], [1], [0, 0, 1, 1], [], []>} : vector<22x160xbf16>, vector<160x64xbf16>, vector<22x64xf32> -> vector<22x64xf32>
    %152 = vector.extract_strided_slice %7 {offsets = [4, 0], sizes = [1, 64], strides = [1, 1]} : vector<14x64xf32> to vector<1x64xf32>
    %153 = vector.extract_strided_slice %7 {offsets = [5, 0], sizes = [1, 64], strides = [1, 1]} : vector<14x64xf32> to vector<1x64xf32>
    %154 = tpu.iota {dimensions = array<i32: 0>} : vector<22x1xi32>
    %c10_i32 = arith.constant 10 : i32
    %155 = vector.broadcast %c10_i32 : i32 to vector<22x1xi32>
    %156 = arith.cmpi slt, %154, %155 : vector<22x1xi32>
    %157 = arith.extui %156 : vector<22x1xi1> to vector<22x1xi32>
    %158 = arith.sitofp %157 : vector<22x1xi32> to vector<22x1xf32>
    %cst_43 = arith.constant 1.000000e+00 : f32
    %159 = vector.broadcast %cst_43 : f32 to vector<22x1xf32>
    %160 = arith.subf %159, %158 : vector<22x1xf32>
    %161 = arith.mulf %151, %151 : vector<22x64xf32>
    %cst_44 = arith.constant dense<0.000000e+00> : vector<64xf32>
    %162 = vector.multi_reduction <add>, %151, %cst_44 [0] : vector<22x64xf32> to vector<64xf32>
    %163 = vector.shape_cast %162 : vector<64xf32> to vector<1x64xf32>
    %cst_45 = arith.constant dense<0.000000e+00> : vector<64xf32>
    %164 = vector.multi_reduction <add>, %161, %cst_45 [0] : vector<22x64xf32> to vector<64xf32>
    %165 = vector.shape_cast %164 : vector<64xf32> to vector<1x64xf32>
    %166 = vector.broadcast %158 : vector<22x1xf32> to vector<22x64xf32>
    %167 = arith.mulf %151, %166 : vector<22x64xf32>
    %cst_46 = arith.constant dense<0.000000e+00> : vector<64xf32>
    %168 = vector.multi_reduction <add>, %167, %cst_46 [0] : vector<22x64xf32> to vector<64xf32>
    %169 = vector.shape_cast %168 : vector<64xf32> to vector<1x64xf32>
    %170 = vector.broadcast %158 : vector<22x1xf32> to vector<22x64xf32>
    %171 = arith.mulf %161, %170 : vector<22x64xf32>
    %cst_47 = arith.constant dense<0.000000e+00> : vector<64xf32>
    %172 = vector.multi_reduction <add>, %171, %cst_47 [0] : vector<22x64xf32> to vector<64xf32>
    %173 = vector.shape_cast %172 : vector<64xf32> to vector<1x64xf32>
    %cst_48 = arith.constant 1.000000e-01 : f32
    %174 = vector.broadcast %cst_48 : f32 to vector<1x64xf32>
    %175 = arith.mulf %169, %174 : vector<1x64xf32>
    %176 = arith.subf %163, %169 : vector<1x64xf32>
    %cst_49 = arith.constant 0.0833333358 : f32
    %177 = vector.broadcast %cst_49 : f32 to vector<1x64xf32>
    %178 = arith.mulf %176, %177 : vector<1x64xf32>
    %cst_50 = arith.constant 1.000000e-01 : f32
    %179 = vector.broadcast %cst_50 : f32 to vector<1x64xf32>
    %180 = arith.mulf %173, %179 : vector<1x64xf32>
    %181 = arith.mulf %175, %175 : vector<1x64xf32>
    %182 = arith.subf %180, %181 : vector<1x64xf32>
    %183 = arith.subf %165, %173 : vector<1x64xf32>
    %cst_51 = arith.constant 0.0833333358 : f32
    %184 = vector.broadcast %cst_51 : f32 to vector<1x64xf32>
    %185 = arith.mulf %183, %184 : vector<1x64xf32>
    %186 = arith.mulf %178, %178 : vector<1x64xf32>
    %187 = arith.subf %185, %186 : vector<1x64xf32>
    %cst_52 = arith.constant 9.99999974E-6 : f32
    %188 = vector.broadcast %cst_52 : f32 to vector<1x64xf32>
    %189 = arith.addf %182, %188 : vector<1x64xf32>
    %190 = math.rsqrt %189 : vector<1x64xf32>
    %191 = arith.mulf %152, %190 : vector<1x64xf32>
    %cst_53 = arith.constant 9.99999974E-6 : f32
    %192 = vector.broadcast %cst_53 : f32 to vector<1x64xf32>
    %193 = arith.addf %187, %192 : vector<1x64xf32>
    %194 = math.rsqrt %193 : vector<1x64xf32>
    %195 = arith.mulf %152, %194 : vector<1x64xf32>
    %196 = arith.mulf %175, %191 : vector<1x64xf32>
    %197 = arith.subf %153, %196 : vector<1x64xf32>
    %198 = arith.mulf %178, %195 : vector<1x64xf32>
    %199 = arith.subf %153, %198 : vector<1x64xf32>
    %200 = vector.broadcast %158 : vector<22x1xf32> to vector<22x64xf32>
    %201 = vector.broadcast %191 : vector<1x64xf32> to vector<22x64xf32>
    %202 = arith.mulf %200, %201 : vector<22x64xf32>
    %203 = vector.broadcast %160 : vector<22x1xf32> to vector<22x64xf32>
    %204 = vector.broadcast %195 : vector<1x64xf32> to vector<22x64xf32>
    %205 = arith.mulf %203, %204 : vector<22x64xf32>
    %206 = arith.addf %202, %205 : vector<22x64xf32>
    %207 = vector.broadcast %158 : vector<22x1xf32> to vector<22x64xf32>
    %208 = vector.broadcast %197 : vector<1x64xf32> to vector<22x64xf32>
    %209 = arith.mulf %207, %208 : vector<22x64xf32>
    %210 = vector.broadcast %160 : vector<22x1xf32> to vector<22x64xf32>
    %211 = vector.broadcast %199 : vector<1x64xf32> to vector<22x64xf32>
    %212 = arith.mulf %210, %211 : vector<22x64xf32>
    %213 = arith.addf %209, %212 : vector<22x64xf32>
    %214 = arith.mulf %151, %206 : vector<22x64xf32>
    %215 = arith.addf %214, %213 : vector<22x64xf32>
    %cst_54 = arith.constant 0.000000e+00 : f32
    %216 = vector.broadcast %cst_54 : f32 to vector<22x64xf32>
    %217 = arith.maximumf %215, %216 : vector<22x64xf32>
    %218 = arith.truncf %217 : vector<22x64xf32> to vector<22x64xbf16>
    %219 = vector.extract_strided_slice %6 {offsets = [128, 0], sizes = [64, 32], strides = [1, 1]} : vector<256x32xbf16> to vector<64x32xbf16>
    %cst_55 = arith.constant dense<0.000000e+00> : vector<22x32xf32>
    %220 = tpu.matmul %218, %219, %cst_55 {dimension_numbers = #tpu.dot_dimension_numbers<[1], [0], [0], [1], [0, 0, 1, 1], [], []>} : vector<22x64xbf16>, vector<64x32xbf16>, vector<22x32xf32> -> vector<22x32xf32>
    %221 = vector.extract_strided_slice %7 {offsets = [10, 0], sizes = [1, 32], strides = [1, 1]} : vector<14x64xf32> to vector<1x32xf32>
    %222 = vector.extract_strided_slice %7 {offsets = [11, 0], sizes = [1, 32], strides = [1, 1]} : vector<14x64xf32> to vector<1x32xf32>
    %223 = tpu.iota {dimensions = array<i32: 0>} : vector<22x1xi32>
    %c10_i32_56 = arith.constant 10 : i32
    %224 = vector.broadcast %c10_i32_56 : i32 to vector<22x1xi32>
    %225 = arith.cmpi slt, %223, %224 : vector<22x1xi32>
    %226 = arith.extui %225 : vector<22x1xi1> to vector<22x1xi32>
    %227 = arith.sitofp %226 : vector<22x1xi32> to vector<22x1xf32>
    %cst_57 = arith.constant 1.000000e+00 : f32
    %228 = vector.broadcast %cst_57 : f32 to vector<22x1xf32>
    %229 = arith.subf %228, %227 : vector<22x1xf32>
    %230 = arith.mulf %220, %220 : vector<22x32xf32>
    %cst_58 = arith.constant dense<0.000000e+00> : vector<32xf32>
    %231 = vector.multi_reduction <add>, %220, %cst_58 [0] : vector<22x32xf32> to vector<32xf32>
    %232 = vector.shape_cast %231 : vector<32xf32> to vector<1x32xf32>
    %cst_59 = arith.constant dense<0.000000e+00> : vector<32xf32>
    %233 = vector.multi_reduction <add>, %230, %cst_59 [0] : vector<22x32xf32> to vector<32xf32>
    %234 = vector.shape_cast %233 : vector<32xf32> to vector<1x32xf32>
    %235 = vector.broadcast %227 : vector<22x1xf32> to vector<22x32xf32>
    %236 = arith.mulf %220, %235 : vector<22x32xf32>
    %cst_60 = arith.constant dense<0.000000e+00> : vector<32xf32>
    %237 = vector.multi_reduction <add>, %236, %cst_60 [0] : vector<22x32xf32> to vector<32xf32>
    %238 = vector.shape_cast %237 : vector<32xf32> to vector<1x32xf32>
    %239 = vector.broadcast %227 : vector<22x1xf32> to vector<22x32xf32>
    %240 = arith.mulf %230, %239 : vector<22x32xf32>
    %cst_61 = arith.constant dense<0.000000e+00> : vector<32xf32>
    %241 = vector.multi_reduction <add>, %240, %cst_61 [0] : vector<22x32xf32> to vector<32xf32>
    %242 = vector.shape_cast %241 : vector<32xf32> to vector<1x32xf32>
    %cst_62 = arith.constant 1.000000e-01 : f32
    %243 = vector.broadcast %cst_62 : f32 to vector<1x32xf32>
    %244 = arith.mulf %238, %243 : vector<1x32xf32>
    %245 = arith.subf %232, %238 : vector<1x32xf32>
    %cst_63 = arith.constant 0.0833333358 : f32
    %246 = vector.broadcast %cst_63 : f32 to vector<1x32xf32>
    %247 = arith.mulf %245, %246 : vector<1x32xf32>
    %cst_64 = arith.constant 1.000000e-01 : f32
    %248 = vector.broadcast %cst_64 : f32 to vector<1x32xf32>
    %249 = arith.mulf %242, %248 : vector<1x32xf32>
    %250 = arith.mulf %244, %244 : vector<1x32xf32>
    %251 = arith.subf %249, %250 : vector<1x32xf32>
    %252 = arith.subf %234, %242 : vector<1x32xf32>
    %cst_65 = arith.constant 0.0833333358 : f32
    %253 = vector.broadcast %cst_65 : f32 to vector<1x32xf32>
    %254 = arith.mulf %252, %253 : vector<1x32xf32>
    %255 = arith.mulf %247, %247 : vector<1x32xf32>
    %256 = arith.subf %254, %255 : vector<1x32xf32>
    %cst_66 = arith.constant 9.99999974E-6 : f32
    %257 = vector.broadcast %cst_66 : f32 to vector<1x32xf32>
    %258 = arith.addf %251, %257 : vector<1x32xf32>
    %259 = math.rsqrt %258 : vector<1x32xf32>
    %260 = arith.mulf %221, %259 : vector<1x32xf32>
    %cst_67 = arith.constant 9.99999974E-6 : f32
    %261 = vector.broadcast %cst_67 : f32 to vector<1x32xf32>
    %262 = arith.addf %256, %261 : vector<1x32xf32>
    %263 = math.rsqrt %262 : vector<1x32xf32>
    %264 = arith.mulf %221, %263 : vector<1x32xf32>
    %265 = arith.mulf %244, %260 : vector<1x32xf32>
    %266 = arith.subf %222, %265 : vector<1x32xf32>
    %267 = arith.mulf %247, %264 : vector<1x32xf32>
    %268 = arith.subf %222, %267 : vector<1x32xf32>
    %269 = vector.broadcast %227 : vector<22x1xf32> to vector<22x32xf32>
    %270 = vector.broadcast %260 : vector<1x32xf32> to vector<22x32xf32>
    %271 = arith.mulf %269, %270 : vector<22x32xf32>
    %272 = vector.broadcast %229 : vector<22x1xf32> to vector<22x32xf32>
    %273 = vector.broadcast %264 : vector<1x32xf32> to vector<22x32xf32>
    %274 = arith.mulf %272, %273 : vector<22x32xf32>
    %275 = arith.addf %271, %274 : vector<22x32xf32>
    %276 = vector.broadcast %227 : vector<22x1xf32> to vector<22x32xf32>
    %277 = vector.broadcast %266 : vector<1x32xf32> to vector<22x32xf32>
    %278 = arith.mulf %276, %277 : vector<22x32xf32>
    %279 = vector.broadcast %229 : vector<22x1xf32> to vector<22x32xf32>
    %280 = vector.broadcast %268 : vector<1x32xf32> to vector<22x32xf32>
    %281 = arith.mulf %279, %280 : vector<22x32xf32>
    %282 = arith.addf %278, %281 : vector<22x32xf32>
    %283 = arith.mulf %220, %275 : vector<22x32xf32>
    %284 = arith.addf %283, %282 : vector<22x32xf32>
    %cst_68 = arith.constant 0.000000e+00 : f32
    %285 = vector.broadcast %cst_68 : f32 to vector<22x32xf32>
    %286 = arith.maximumf %284, %285 : vector<22x32xf32>
    %287 = tpu.concatenate %79, %149 in 1 : vector<16x32xf32>, vector<16x32xf32> -> vector<16x64xf32>
    %288 = arith.truncf %287 : vector<16x64xf32> to vector<16x64xbf16>
    %289 = vector.extract_strided_slice %6 {offsets = [192, 0], sizes = [64, 32], strides = [1, 1]} : vector<256x32xbf16> to vector<64x32xbf16>
    %cst_69 = arith.constant dense<0.000000e+00> : vector<16x32xf32>
    %290 = tpu.matmul %288, %289, %cst_69 {dimension_numbers = #tpu.dot_dimension_numbers<[1], [0], [0], [1], [0, 0, 1, 1], [], []>} : vector<16x64xbf16>, vector<64x32xbf16>, vector<16x32xf32> -> vector<16x32xf32>
    %291 = vector.extract_strided_slice %7 {offsets = [12, 0], sizes = [1, 32], strides = [1, 1]} : vector<14x64xf32> to vector<1x32xf32>
    %292 = vector.extract_strided_slice %7 {offsets = [13, 0], sizes = [1, 32], strides = [1, 1]} : vector<14x64xf32> to vector<1x32xf32>
    %cst_70 = arith.constant dense<0.000000e+00> : vector<32xf32>
    %293 = vector.multi_reduction <add>, %290, %cst_70 [0] : vector<16x32xf32> to vector<32xf32>
    %294 = vector.shape_cast %293 : vector<32xf32> to vector<1x32xf32>
    %cst_71 = arith.constant 6.250000e-02 : f32
    %295 = vector.broadcast %cst_71 : f32 to vector<1x32xf32>
    %296 = arith.mulf %294, %295 : vector<1x32xf32>
    %297 = arith.mulf %290, %290 : vector<16x32xf32>
    %cst_72 = arith.constant dense<0.000000e+00> : vector<32xf32>
    %298 = vector.multi_reduction <add>, %297, %cst_72 [0] : vector<16x32xf32> to vector<32xf32>
    %299 = vector.shape_cast %298 : vector<32xf32> to vector<1x32xf32>
    %cst_73 = arith.constant 6.250000e-02 : f32
    %300 = vector.broadcast %cst_73 : f32 to vector<1x32xf32>
    %301 = arith.mulf %299, %300 : vector<1x32xf32>
    %302 = arith.mulf %296, %296 : vector<1x32xf32>
    %303 = arith.subf %301, %302 : vector<1x32xf32>
    %cst_74 = arith.constant 9.99999974E-6 : f32
    %304 = vector.broadcast %cst_74 : f32 to vector<1x32xf32>
    %305 = arith.addf %303, %304 : vector<1x32xf32>
    %306 = math.rsqrt %305 : vector<1x32xf32>
    %307 = arith.mulf %291, %306 : vector<1x32xf32>
    %308 = arith.mulf %296, %307 : vector<1x32xf32>
    %309 = arith.subf %292, %308 : vector<1x32xf32>
    %310 = vector.broadcast %307 : vector<1x32xf32> to vector<16x32xf32>
    %311 = arith.mulf %290, %310 : vector<16x32xf32>
    %312 = vector.broadcast %309 : vector<1x32xf32> to vector<16x32xf32>
    %313 = arith.addf %311, %312 : vector<16x32xf32>
    %cst_75 = arith.constant 0.000000e+00 : f32
    %314 = vector.broadcast %cst_75 : f32 to vector<16x32xf32>
    %315 = arith.maximumf %313, %314 : vector<16x32xf32>
    %c0_76 = arith.constant 0 : index
    %c0_77 = arith.constant 0 : index
    %316 = vector.load %arg6[%c0_76, %c0_77] : memref<38x32xf32, #tpu.memory_space<vmem>>, vector<16x32xf32>
    tpu.vector_store %arg6[%c0_76, %c0_77], %315 {strides = array<i32>} : memref<38x32xf32, #tpu.memory_space<vmem>>, vector<16x32xf32>,
    %c16 = arith.constant 16 : index
    %c0_78 = arith.constant 0 : index
    %317 = vector.load %arg6[%c16, %c0_78] : memref<38x32xf32, #tpu.memory_space<vmem>>, vector<22x32xf32>
    tpu.vector_store %arg6[%c16, %c0_78], %286 {strides = array<i32>} : memref<38x32xf32, #tpu.memory_space<vmem>>, vector<22x32xf32>,
    return
  }
}

</mosaic_0001>

<llo_original>
// kernel: conv_layer_forward.1
$region0: #{conv_layer_forward.1}
  #allocation0 [shape = 'u32[]', space=smem, size = 0x4, offset = 0x4, fixed_abs, tag = 'smem constant byte address 0x4 - core index']
  #allocation1 [shape = 'u32[144,128]{1,0:T(1,128)}', space=vmem, size = 0x12000, scoped, tag = 'internal scratch']
  %s0 = inlined_call_operand.vmem [shape: f32[38,32], index: 0, kind: input, shape index: {}]
  %s1 = inlined_call_operand.vmem [shape: bf16[108,16], index: 1, kind: input, shape index: {}]
  %s2 = inlined_call_operand.vmem [shape: bf16[76,22], index: 2, kind: input, shape index: {}]
  %s3 = inlined_call_operand.vmem [shape: bf16[672,64], index: 3, kind: input, shape index: {}]
  %s4 = inlined_call_operand.vmem [shape: bf16[256,32], index: 4, kind: input, shape index: {}]
  %s5 = inlined_call_operand.vmem [shape: f32[14,64], index: 5, kind: input, shape index: {}]
  %s6 = inlined_call_operand.vmem [shape: f32[38,32], index: 6, kind: output, shape index: {}]
  %s7 = sld [smem:[#allocation0]]
  $region34: #{conv_layer_forward.1} parent=0
    _
  %s9 = ssub.s32 1, %s7
  %s10 = scalar_select 0, %s9, %s7
  // Predicated region
  $region2: #{conv_layer_forward.1} parent=0 // pred_check
    _
  $region3: #{conv_layer_forward.1} parent=0 // pred_check_branch
    %12 = sbr.rel (0) target = $region5
  $region4: #{conv_layer_forward.1} parent=0 // pred_region
    _
  $region5: #{conv_layer_forward.1} parent=0 // pred_fallthru
    _
  // Predicated region
  $region6: #{conv_layer_forward.1} parent=0 // pred_check
    _
  $region7: #{conv_layer_forward.1} parent=0 // pred_check_branch
    %14 = sbr.rel (0) target = $region9
  $region8: #{conv_layer_forward.1} parent=0 // pred_region
    _
  $region9: #{conv_layer_forward.1} parent=0 // pred_fallthru
    _
  // Predicated region
  $region10: #{conv_layer_forward.1} parent=0 // pred_check
    _
  $region11: #{conv_layer_forward.1} parent=0 // pred_check_branch
    %16 = sbr.rel (0) target = $region13
  $region12: #{conv_layer_forward.1} parent=0 // pred_region
    _
  $region13: #{conv_layer_forward.1} parent=0 // pred_fallthru
    _
  // Predicated region
  $region14: #{conv_layer_forward.1} parent=0 // pred_check
    _
  $region15: #{conv_layer_forward.1} parent=0 // pred_check_branch
    %18 = sbr.rel (0) target = $region17
  $region16: #{conv_layer_forward.1} parent=0 // pred_region
    _
  $region17: #{conv_layer_forward.1} parent=0 // pred_fallthru
    _
  // Predicated region
  $region18: #{conv_layer_forward.1} parent=0 // pred_check
    _
  $region19: #{conv_layer_forward.1} parent=0 // pred_check_branch
    %20 = sbr.rel (0) target = $region21
  $region20: #{conv_layer_forward.1} parent=0 // pred_region
    _
  $region21: #{conv_layer_forward.1} parent=0 // pred_fallthru
    _
  // Predicated region
  $region22: #{conv_layer_forward.1} parent=0 // pred_check
    _
  $region23: #{conv_layer_forward.1} parent=0 // pred_check_branch
    %22 = sbr.rel (0) target = $region25
  $region24: #{conv_layer_forward.1} parent=0 // pred_region
    _
  $region25: #{conv_layer_forward.1} parent=0 // pred_fallthru
    _
  %v24 = vld [vmem:[%s0] sm:$0xff]
  %v25 = vld [vmem:[%s0 + $0x8] sm:$0xff]
  %v26 = vld [vmem:[%s0 + $0x10] sm:$0xff]
  %v27 = vld [vmem:[%s0 + $0x18] sm:$0xff]
  %v28 = vld [vmem:[%s0 + $0x20] sm:$0x3f]
  %v29 = vld [vmem:[%s1] sm:$0xf]
  %v30 = vld [vmem:[%s1 + $0x4] sm:$0xf]
  %v31 = vld [vmem:[%s1 + $0x8] sm:$0xf]
  %v32 = vld [vmem:[%s1 + $0xc] sm:$0xf]
  %v33 = vld [vmem:[%s1 + $0x10] sm:$0xf]
  %v34 = vld [vmem:[%s1 + $0x14] sm:$0xf]
  %v35 = vld [vmem:[%s1 + $0x18] sm:$0xf]
  %v36 = vld [vmem:[%s1 + $0x1c] sm:$0xf]
  %v37 = vld [vmem:[%s1 + $0x20] sm:$0xf]
  %v38 = vld [vmem:[%s1 + $0x24] sm:$0xf]
  %v39 = vld [vmem:[%s1 + $0x28] sm:$0xf]
  %v40 = vld [vmem:[%s1 + $0x2c] sm:$0xf]
  %v41 = vld [vmem:[%s1 + $0x30] sm:$0xf]
  %v42 = vld [vmem:[%s1 + $0x34] sm:$0x3]
  %v43 = vld [vmem:[%s2] sm:$0xf]
  %v44 = vld [vmem:[%s2 + $0x4] sm:$0xf]
  %v45 = vld [vmem:[%s2 + $0x8] sm:$0xf]
  %v46 = vld [vmem:[%s2 + $0xc] sm:$0xf]
  %v47 = vld [vmem:[%s2 + $0x10] sm:$0xf]
  %v48 = vld [vmem:[%s2 + $0x14] sm:$0xf]
  %v49 = vld [vmem:[%s2 + $0x18] sm:$0xf]
  %v50 = vld [vmem:[%s2 + $0x1c] sm:$0xf]
  %v51 = vld [vmem:[%s2 + $0x20] sm:$0xf]
  %v52 = vld [vmem:[%s2 + $0x24] sm:$0x3]
  %v53 = vld [vmem:[%s3] sm:$0xf]
  %v54 = vld [vmem:[%s3 + $0x4] sm:$0xf]
  %v55 = vld [vmem:[%s3 + $0x8] sm:$0xf]
  %v56 = vld [vmem:[%s3 + $0xc] sm:$0xf]
  %v57 = vld [vmem:[%s3 + $0x10] sm:$0xf]
  %v58 = vld [vmem:[%s3 + $0x14] sm:$0xf]
  %v59 = vld [vmem:[%s3 + $0x18] sm:$0xf]
  %v60 = vld [vmem:[%s3 + $0x1c] sm:$0xf]
  %v61 = vld [vmem:[%s3 + $0x20] sm:$0xf]
  %v62 = vld [vmem:[%s3 + $0x24] sm:$0xf]
  %v63 = vld [vmem:[%s3 + $0x28] sm:$0xf]
  %v64 = vld [vmem:[%s3 + $0x2c] sm:$0xf]
  %v65 = vld [vmem:[%s3 + $0x30] sm:$0xf]
  %v66 = vld [vmem:[%s3 + $0x34] sm:$0xf]
  %v67 = vld [vmem:[%s3 + $0x38] sm:$0xf]
  %v68 = vld [vmem:[%s3 + $0x3c] sm:$0xf]
  %v69 = vld [vmem:[%s3 + $0x40] sm:$0xf]
  %v70 = vld [vmem:[%s3 + $0x44] sm:$0xf]
  %v71 = vld [vmem:[%s3 + $0x48] sm:$0xf]
  %v72 = vld [vmem:[%s3 + $0x4c] sm:$0xf]
  %v73 = vld [vmem:[%s3 + $0x50] sm:$0xf]
  %v74 = vld [vmem:[%s3 + $0x54] sm:$0xf]
  %v75 = vld [vmem:[%s3 + $0x58] sm:$0xf]
  %v76 = vld [vmem:[%s3 + $0x5c] sm:$0xf]
  %v77 = vld [vmem:[%s3 + $0x60] sm:$0xf]
  %v78 = vld [vmem:[%s3 + $0x64] sm:$0xf]
  %v79 = vld [vmem:[%s3 + $0x68] sm:$0xf]
  %v80 = vld [vmem:[%s3 + $0x6c] sm:$0xf]
  %v81 = vld [vmem:[%s3 + $0x70] sm:$0xf]
  %v82 = vld [vmem:[%s3 + $0x74] sm:$0xf]
  %v83 = vld [vmem:[%s3 + $0x78] sm:$0xf]
  %v84 = vld [vmem:[%s3 + $0x7c] sm:$0xf]
  %v85 = vld [vmem:[%s3 + $0x80] sm:$0xf]
  %v86 = vld [vmem:[%s3 + $0x84] sm:$0xf]
  %v87 = vld [vmem:[%s3 + $0x88] sm:$0xf]
  %v88 = vld [vmem:[%s3 + $0x8c] sm:$0xf]
  %v89 = vld [vmem:[%s3 + $0x90] sm:$0xf]
  %v90 = vld [vmem:[%s3 + $0x94] sm:$0xf]
  %v91 = vld [vmem:[%s3 + $0x98] sm:$0xf]
  %v92 = vld [vmem:[%s3 + $0x9c] sm:$0xf]
  %v93 = vld [vmem:[%s3 + $0xa0] sm:$0xf]
  %v94 = vld [vmem:[%s3 + $0xa4] sm:$0xf]
  %v95 = vld [vmem:[%s3 + $0xa8] sm:$0xf]
  %v96 = vld [vmem:[%s3 + $0xac] sm:$0xf]
  %v97 = vld [vmem:[%s3 + $0xb0] sm:$0xf]
  %v98 = vld [vmem:[%s3 + $0xb4] sm:$0xf]
  %v99 = vld [vmem:[%s3 + $0xb8] sm:$0xf]
  %v100 = vld [vmem:[%s3 + $0xbc] sm:$0xf]
  %v101 = vld [vmem:[%s3 + $0xc0] sm:$0xf]
  %v102 = vld [vmem:[%s3 + $0xc4] sm:$0xf]
  %v103 = vld [vmem:[%s3 + $0xc8] sm:$0xf]
  %v104 = vld [vmem:[%s3 + $0xcc] sm:$0xf]
  %v105 = vld [vmem:[%s3 + $0xd0] sm:$0xf]
  %v106 = vld [vmem:[%s3 + $0xd4] sm:$0xf]
  %v107 = vld [vmem:[%s3 + $0xd8] sm:$0xf]
  %v108 = vld [vmem:[%s3 + $0xdc] sm:$0xf]
  %v109 = vld [vmem:[%s3 + $0xe0] sm:$0xf]
  %v110 = vld [vmem:[%s3 + $0xe4] sm:$0xf]
  %v111 = vld [vmem:[%s3 + $0xe8] sm:$0xf]
  %v112 = vld [vmem:[%s3 + $0xec] sm:$0xf]
  %v113 = vld [vmem:[%s3 + $0xf0] sm:$0xf]
  %v114 = vld [vmem:[%s3 + $0xf4] sm:$0xf]
  %v115 = vld [vmem:[%s3 + $0xf8] sm:$0xf]
  %v116 = vld [vmem:[%s3 + $0xfc] sm:$0xf]
  %v117 = vld [vmem:[%s3 + $0x100] sm:$0xf]
  %v118 = vld [vmem:[%s3 + $0x104] sm:$0xf]
  %v119 = vld [vmem:[%s3 + $0x108] sm:$0xf]
  %v120 = vld [vmem:[%s3 + $0x10c] sm:$0xf]
  %v121 = vld [vmem:[%s3 + $0x110] sm:$0xf]
  %v122 = vld [vmem:[%s3 + $0x114] sm:$0xf]
  %v123 = vld [vmem:[%s3 + $0x118] sm:$0xf]
  %v124 = vld [vmem:[%s3 + $0x11c] sm:$0xf]
  %v125 = vld [vmem:[%s3 + $0x120] sm:$0xf]
  %v126 = vld [vmem:[%s3 + $0x124] sm:$0xf]
  %v127 = vld [vmem:[%s3 + $0x128] sm:$0xf]
  %v128 = vld [vmem:[%s3 + $0x12c] sm:$0xf]
  %v129 = vld [vmem:[%s3 + $0x130] sm:$0xf]
  %v130 = vld [vmem:[%s3 + $0x134] sm:$0xf]
  %v131 = vld [vmem:[%s3 + $0x138] sm:$0xf]
  %v132 = vld [vmem:[%s3 + $0x13c] sm:$0xf]
  %v133 = vld [vmem:[%s3 + $0x140] sm:$0xf]
  %v134 = vld [vmem:[%s3 + $0x144] sm:$0xf]
  %v135 = vld [vmem:[%s3 + $0x148] sm:$0xf]
  %v136 = vld [vmem:[%s3 + $0x14c] sm:$0xf]
  %v137 = vld [vmem:[%s4] sm:$0xf]
  %v138 = vld [vmem:[%s4 + $0x4] sm:$0xf]
  %v139 = vld [vmem:[%s4 + $0x8] sm:$0xf]
  %v140 = vld [vmem:[%s4 + $0xc] sm:$0xf]
  %v141 = vld [vmem:[%s4 + $0x10] sm:$0xf]
  %v142 = vld [vmem:[%s4 + $0x14] sm:$0xf]
  %v143 = vld [vmem:[%s4 + $0x18] sm:$0xf]
  %v144 = vld [vmem:[%s4 + $0x1c] sm:$0xf]
  %v145 = vld [vmem:[%s4 + $0x20] sm:$0xf]
  %v146 = vld [vmem:[%s4 + $0x24] sm:$0xf]
  %v147 = vld [vmem:[%s4 + $0x28] sm:$0xf]
  %v148 = vld [vmem:[%s4 + $0x2c] sm:$0xf]
  %v149 = vld [vmem:[%s4 + $0x30] sm:$0xf]
  %v150 = vld [vmem:[%s4 + $0x34] sm:$0xf]
  %v151 = vld [vmem:[%s4 + $0x38] sm:$0xf]
  %v152 = vld [vmem:[%s4 + $0x3c] sm:$0xf]
  %v153 = vld [vmem:[%s4 + $0x40] sm:$0xf]
  %v154 = vld [vmem:[%s4 + $0x44] sm:$0xf]
  %v155 = vld [vmem:[%s4 + $0x48] sm:$0xf]
  %v156 = vld [vmem:[%s4 + $0x4c] sm:$0xf]
  %v157 = vld [vmem:[%s4 + $0x50] sm:$0xf]
  %v158 = vld [vmem:[%s4 + $0x54] sm:$0xf]
  %v159 = vld [vmem:[%s4 + $0x58] sm:$0xf]
  %v160 = vld [vmem:[%s4 + $0x5c] sm:$0xf]
  %v161 = vld [vmem:[%s4 + $0x60] sm:$0xf]
  %v162 = vld [vmem:[%s4 + $0x64] sm:$0xf]
  %v163 = vld [vmem:[%s4 + $0x68] sm:$0xf]
  %v164 = vld [vmem:[%s4 + $0x6c] sm:$0xf]
  %v165 = vld [vmem:[%s4 + $0x70] sm:$0xf]
  %v166 = vld [vmem:[%s4 + $0x74] sm:$0xf]
  %v167 = vld [vmem:[%s4 + $0x78] sm:$0xf]
  %v168 = vld [vmem:[%s4 + $0x7c] sm:$0xf]
  %v169 = vld [vmem:[%s5] sm:$0xff]
  %v170 = vld [vmem:[%s5 + $0x8] sm:$0x3f]
  %v171 = vpack.c.bf16 %v25, %v24
  %v182 = vunpack.c.l.b16 %v29
  %v183 = vunpack.c.l.b16 %v30
  %v184 = vunpack.c.l.b16 %v31
  %v185 = vunpack.c.l.b16 %v32
  %v186 = vunpack.c.l.b16 %v33
  %v187 = vunpack.c.l.b16 %v34
  %v188 = vunpack.c.l.b16 %v35
  %v189 = vunpack.c.l.b16 %v36
  %v190 = vunpack.c.l.b16 %v37
  %v191 = vunpack.c.l.b16 %v38
  %v192 = vpack.c.b16 %v183, %v182
  %v193 = vpack.c.b16 %v185, %v184
  %v194 = vpack.c.b16 %v187, %v186
  %v195 = vpack.c.b16 %v189, %v188
  %v196 = vpack.c.b16 %v191, %v190
  %vm197 = vcmask 130048
  %v199 = vsel %vm197, %v192, 0
  %v202 = vsel %vm197, %v193, 0
  %v205 = vsel %vm197, %v194, 0
  %v208 = vsel %vm197, %v195, 0
  %v211 = vsel %vm197, %v196, 0
  %213 = vmatprep.subr.bf16.mxu0 0
  %214 = vmatpush1.bf16.msra.mxu0 %v171
  %215 = vmatprep.subr.bf16.mxu0 0
  %216 = vmatpush1.bf16.msra.mxu0 0
  %217 = vmatprep.subr.bf16.mxu0 0
  %218 = vmatpush1.bf16.msra.mxu0 0
  %219 = vmatprep.subr.bf16.mxu0 0
  %220 = vmatpush1.bf16.msra.mxu0 0
  %221 = vmatprep.subr.bf16.mxu0 0
  %222 = vmatpush1.bf16.msra.mxu0 0
  %223 = vmatprep.subr.bf16.mxu0 0
  %224 = vmatpush1.bf16.msra.mxu0 0
  %225 = vmatprep.subr.bf16.mxu0 0
  %226 = vmatpush1.bf16.msra.mxu0 0
  %227 = vmatprep.subr.bf16.mxu0 0
  %228 = vmatpush1.bf16.msra.mxu0 0
  %229 = vmatprep.subr.bf16.mxu0 0
  %230 = vmatpush1.bf16.msra.mxu0 0
  %231 = vmatprep.subr.bf16.mxu0 0
  %232 = vmatpush1.bf16.msra.mxu0 0
  %233 = vmatprep.subr.bf16.mxu0 0
  %234 = vmatpush1.bf16.msra.mxu0 0
  %235 = vmatprep.subr.bf16.mxu0 0
  %236 = vmatpush1.bf16.msra.mxu0 0
  %237 = vmatprep.subr.bf16.mxu0 0
  %238 = vmatpush1.bf16.msra.mxu0 0
  %239 = vmatprep.subr.bf16.mxu0 0
  %240 = vmatpush1.bf16.msra.mxu0 0
  %241 = vmatprep.subr.bf16.mxu0 0
  %242 = vmatpush1.bf16.msra.mxu0 0
  %243 = vmatprep.subr.bf16.mxu0 0
  %244 = vmatpush1.bf16.msra.mxu0 0
  %245 = vmatprep.mubr.bf16.mxu0 0
  %246 = vmatmul.mubr.bf16.gmra.mrb[0].mxu0 %v199
  %v247 = vpop.f32.mrb[0].mxu0
  %v248 = vadd.f32 0.0, %v247
  %v249 = vpop.f32.mrb[0].mxu0
  %v250 = vpop.f32.mrb[0].mxu0
  %v251 = vadd.f32 0.0, %v250
  %v252 = vpop.f32.mrb[0].mxu0
  %253 = vmatprep.mubr.bf16.mxu0 0
  %254 = vmatmul.mubr.bf16.gmra.mrb[0].mxu0 %v202
  %v255 = vpop.f32.mrb[0].mxu0
  %v256 = vadd.f32 0.0, %v255
  %v257 = vpop.f32.mrb[0].mxu0
  %v258 = vpop.f32.mrb[0].mxu0
  %v259 = vadd.f32 0.0, %v258
  %v260 = vpop.f32.mrb[0].mxu0
  %261 = vmatprep.mubr.bf16.mxu0 0
  %262 = vmatmul.mubr.bf16.gmra.mrb[0].mxu0 %v205
  %v263 = vpop.f32.mrb[0].mxu0
  %v264 = vadd.f32 0.0, %v263
  %v265 = vpop.f32.mrb[0].mxu0
  %v266 = vpop.f32.mrb[0].mxu0
  %v267 = vadd.f32 0.0, %v266
  %v268 = vpop.f32.mrb[0].mxu0
  %269 = vmatprep.mubr.bf16.mxu0 0
  %270 = vmatmul.mubr.bf16.gmra.mrb[0].mxu0 %v208
  %v271 = vpop.f32.mrb[0].mxu0
  %v272 = vadd.f32 0.0, %v271
  %v273 = vpop.f32.mrb[0].mxu0
  %v274 = vpop.f32.mrb[0].mxu0
  %v275 = vadd.f32 0.0, %v274
  %v276 = vpop.f32.mrb[0].mxu0
  %277 = vmatprep.mubr.bf16.mxu0 0
  %278 = vmatmul.mubr.bf16.gmra.mrb[0].mxu0 %v211
  %v279 = vpop.f32.mrb[0].mxu0
  %v280 = vadd.f32 0.0, %v279
  %v281 = vpop.f32.mrb[0].mxu0
  %v282 = vpop.f32.mrb[0].mxu0
  %v283 = vadd.f32 0.0, %v282
  %v284 = vpop.f32.mrb[0].mxu0
  %285 = vdwg.mxu0
  %288 = vrot.lane.b32.xlu0 %v256, 32
  %v289 = vpop.permute.xlu0 %288
  %290 = vrot.lane.b32.xlu0 %v259, 32
  %v291 = vpop.permute.xlu0 %290
  %vm294 = vcmask 261120
  %v295 = vsel %vm294, %v248, %v289
  %v296 = vsel %vm294, %v251, %v291
  %vm301 = vcmask 1041408
  %v302 = vrot.slane %v272, 6
  %v303 = vrot.slane %v275, 6
  %v304 = vsel %vm301, %v302, %v303
  %v305 = vrot.slane %v280, 6
  %v306 = vsel %vm301, %v303, %v305
  %v307 = vrot.slane %v283, 6
  %v308 = vsel %vm301, %v305, %v307
  %309 = vrot.lane.b32.xlu0 %v304, 32
  %v310 = vpop.permute.xlu0 %309
  %311 = vrot.lane.b32.xlu0 %v306, 32
  %v312 = vpop.permute.xlu0 %311
  %313 = vrot.lane.b32.xlu0 %v308, 32
  %v314 = vpop.permute.xlu0 %313
  %v318 = vsel %vm294, %v264, %v310
  %v319 = vsel %vm294, %v267, %v312
  %v320 = vsel %vm294, %v272, %v314
  %v321 = vpack.c.bf16 %v296, %v295
  %v326 = vunpack.c.l.b16 %v39
  %v327 = vunpack.c.l.b16 %v40
  %v328 = vunpack.c.l.b16 %v41
  %v329 = vunpack.c.l.b16 %v42
  %v330 = vpack.c.b16 %v326, %v191
  %v331 = vpack.c.b16 %v328, %v327
  %v332 = vpack.c.b16 %v329, %v329
  %vm333 = vcmask 1045504
  %v334 = vrot.slane %v330, 2
  %v335 = vrot.slane %v331, 2
  %v336 = vsel %vm333, %v334, %v335
  %v337 = vrot.slane %v332, 2
  %v338 = vsel %vm333, %v335, %v337
  %v340 = vsel %vm197, %v336, 0
  %v343 = vsel %vm197, %v338, 0
  %345 = vmatprep.subr.bf16.mxu0 0
  %346 = vmatpush1.bf16.msra.mxu0 %v321
  %347 = vmatprep.subr.bf16.mxu0 0
  %348 = vmatpush1.bf16.msra.mxu0 0
  %349 = vmatprep.subr.bf16.mxu0 0
  %350 = vmatpush1.bf16.msra.mxu0 0
  %351 = vmatprep.subr.bf16.mxu0 0
  %352 = vmatpush1.bf16.msra.mxu0 0
  %353 = vmatprep.subr.bf16.mxu0 0
  %354 = vmatpush1.bf16.msra.mxu0 0
  %355 = vmatprep.subr.bf16.mxu0 0
  %356 = vmatpush1.bf16.msra.mxu0 0
  %357 = vmatprep.subr.bf16.mxu0 0
  %358 = vmatpush1.bf16.msra.mxu0 0
  %359 = vmatprep.subr.bf16.mxu0 0
  %360 = vmatpush1.bf16.msra.mxu0 0
  %361 = vmatprep.subr.bf16.mxu0 0
  %362 = vmatpush1.bf16.msra.mxu0 0
  %363 = vmatprep.subr.bf16.mxu0 0
  %364 = vmatpush1.bf16.msra.mxu0 0
  %365 = vmatprep.subr.bf16.mxu0 0
  %366 = vmatpush1.bf16.msra.mxu0 0
  %367 = vmatprep.subr.bf16.mxu0 0
  %368 = vmatpush1.bf16.msra.mxu0 0
  %369 = vmatprep.subr.bf16.mxu0 0
  %370 = vmatpush1.bf16.msra.mxu0 0
  %371 = vmatprep.subr.bf16.mxu0 0
  %372 = vmatpush1.bf16.msra.mxu0 0
  %373 = vmatprep.subr.bf16.mxu0 0
  %374 = vmatpush1.bf16.msra.mxu0 0
  %375 = vmatprep.subr.bf16.mxu0 0
  %376 = vmatpush1.bf16.msra.mxu0 0
  %377 = vmatprep.mubr.bf16.mxu0 0
  %378 = vmatmul.mubr.bf16.gmra.mrb[0].mxu0 %v340
  %v379 = vpop.f32.mrb[0].mxu0
  %v380 = vadd.f32 0.0, %v379
  %v381 = vpop.f32.mrb[0].mxu0
  %v382 = vpop.f32.mrb[0].mxu0
  %v383 = vadd.f32 0.0, %v382
  %v384 = vpop.f32.mrb[0].mxu0
  %385 = vmatprep.mubr.bf16.mxu0 0
  %386 = vmatmul.mubr.bf16.gmra.mrb[0].mxu0 %v343
  %v387 = vpop.f32.mrb[0].mxu0
  %v388 = vadd.f32 0.0, %v387
  %v389 = vpop.f32.mrb[0].mxu0
  %v390 = vpop.f32.mrb[0].mxu0
  %v391 = vadd.f32 0.0, %v390
  %v392 = vpop.f32.mrb[0].mxu0
  %393 = vdwg.mxu0
  %396 = vrot.lane.b32.xlu0 %v388, 64
  %v397 = vpop.permute.xlu0 %396
  %398 = vrot.lane.b32.xlu0 %v391, 64
  %v399 = vpop.permute.xlu0 %398
  %vm402 = vcmask 523264
  %v403 = vsel %vm402, %v380, %v397
  %v404 = vsel %vm402, %v383, %v399
  %407 = vrot.lane.b32.xlu0 %v403, 32
  %v408 = vpop.permute.xlu0 %407
  %409 = vrot.lane.b32.xlu0 %v404, 32
  %v410 = vpop.permute.xlu0 %409
  %v413 = vsel %vm294, %v24, %v408
  %v414 = vsel %vm294, %v25, %v410
  %v415 = vpack.c.bf16 %v414, %v413
  %v416 = vpack.c.bf16 %v410, %v408
  %v437 = vunpack.c.l.b16 %v53
  %v438 = vunpack.c.l.b16 %v54
  %v439 = vunpack.c.l.b16 %v55
  %v440 = vunpack.c.l.b16 %v56
  %v441 = vunpack.c.l.b16 %v57
  %v442 = vunpack.c.l.b16 %v58
  %v443 = vunpack.c.l.b16 %v59
  %v444 = vunpack.c.l.b16 %v60
  %v445 = vunpack.c.l.b16 %v61
  %v446 = vunpack.c.l.b16 %v62
  %v447 = vunpack.c.l.b16 %v63
  %v448 = vunpack.c.l.b16 %v64
  %v449 = vunpack.c.l.b16 %v65
  %v450 = vunpack.c.l.b16 %v66
  %v451 = vunpack.c.l.b16 %v67
  %v452 = vunpack.c.l.b16 %v68
  %v453 = vunpack.c.l.b16 %v69
  %v454 = vunpack.c.l.b16 %v70
  %v455 = vunpack.c.l.b16 %v71
  %v456 = vunpack.c.l.b16 %v72
  %v457 = vpack.c.b16 %v438, %v437
  %v458 = vpack.c.b16 %v440, %v439
  %v459 = vpack.c.b16 %v442, %v441
  %v460 = vpack.c.b16 %v444, %v443
  %v461 = vpack.c.b16 %v446, %v445
  %v462 = vpack.c.b16 %v448, %v447
  %v463 = vpack.c.b16 %v450, %v449
  %v464 = vpack.c.b16 %v452, %v451
  %v465 = vpack.c.b16 %v454, %v453
  %v466 = vpack.c.b16 %v456, %v455
  %v478 = vsel %vm294, %v416, 0
  %480 = vmatprep.subr.bf16.mxu0 0
  %481 = vmatpush1.bf16.msra.mxu0 %v457
  %482 = vmatprep.subr.bf16.mxu0 0
  %483 = vmatpush1.bf16.msra.mxu0 %v458
  %484 = vmatprep.subr.bf16.mxu0 0
  %485 = vmatpush1.bf16.msra.mxu0 %v459
  %486 = vmatprep.subr.bf16.mxu0 0
  %487 = vmatpush1.bf16.msra.mxu0 %v460
  %488 = vmatprep.subr.bf16.mxu0 0
  %489 = vmatpush1.bf16.msra.mxu0 %v461
  %490 = vmatprep.subr.bf16.mxu0 0
  %491 = vmatpush1.bf16.msra.mxu0 %v462
  %492 = vmatprep.subr.bf16.mxu0 0
  %493 = vmatpush1.bf16.msra.mxu0 %v463
  %494 = vmatprep.subr.bf16.mxu0 0
  %495 = vmatpush1.bf16.msra.mxu0 %v464
  %496 = vmatprep.subr.bf16.mxu0 0
  %497 = vmatpush1.bf16.msra.mxu0 %v465
  %498 = vmatprep.subr.bf16.mxu0 0
  %499 = vmatpush1.bf16.msra.mxu0 %v466
  %500 = vmatprep.subr.bf16.mxu0 0
  %501 = vmatpush1.bf16.msra.mxu0 0
  %502 = vmatprep.subr.bf16.mxu0 0
  %503 = vmatpush1.bf16.msra.mxu0 0
  %504 = vmatprep.subr.bf16.mxu0 0
  %505 = vmatpush1.bf16.msra.mxu0 0
  %506 = vmatprep.subr.bf16.mxu0 0
  %507 = vmatpush1.bf16.msra.mxu0 0
  %508 = vmatprep.subr.bf16.mxu0 0
  %509 = vmatpush1.bf16.msra.mxu0 0
  %510 = vmatprep.subr.bf16.mxu0 0
  %511 = vmatpush1.bf16.msra.mxu0 0
  %512 = vmatprep.mubr.bf16.mxu0 %v478
  %513 = vmatmul.mubr.bf16.gmra.mrb[0].mxu0 %v415
  %v514 = vpop.f32.mrb[0].mxu0
  %v515 = vadd.f32 0.0, %v514
  %v516 = vpop.f32.mrb[0].mxu0
  %v517 = vpop.f32.mrb[0].mxu0
  %v518 = vadd.f32 0.0, %v517
  %v519 = vpop.f32.mrb[0].mxu0
  %520 = vdwg.mxu0
  %v521 = vsel %vm402, %v515, 0.0
  %v522 = vsel %vm402, %v518, 0.0
  %v523 = vadd.f32 %v521, %v522
  %v524 = vrot.slane %v523, 4
  %v525 = vadd.f32 %v523, %v524
  %v526 = vrot.slane %v525, 2
  %v527 = vadd.f32 %v525, %v526
  %v528 = vrot.slane %v527, 1
  %v529 = vadd.f32 %v527, %v528
  %v530 = vmul.f32 %v529, 0.0625
  %v531 = vmul.f32 %v515, %v515
  %v532 = vmul.f32 %v518, %v518
  %v533 = vsel %vm402, %v531, 0.0
  %v534 = vsel %vm402, %v532, 0.0
  %v535 = vadd.f32 %v533, %v534
  %v536 = vrot.slane %v535, 4
  %v537 = vadd.f32 %v535, %v536
  %v538 = vrot.slane %v537, 2
  %v539 = vadd.f32 %v537, %v538
  %v540 = vrot.slane %v539, 1
  %v541 = vadd.f32 %v539, %v540
  %v542 = vmul.f32 %v541, 0.0625
  %v543 = vmul.f32 %v530, %v530
  %v544 = vsub.f32 %v542, %v543
  %v545 = vadd.f32 %v544, 1e-05
  %v546 = vrsqrt.pop %v545
  %v547 = vmul.f32 %v169, %v546
  %v548 = vmul.f32 %v530, %v547
  %v550 = vrot.slane %v548, 7
  %v552 = vsub.f32 %v169, %v550
  %v553 = vlaneseq
  %v554 = vshrl.u32 %v553, 7
  %v555 = vsub.s32 0, %v554
  %v556 = vrot.slane %v547, %v555
  %v557 = vmul.f32 %v515, %v556
  %v558 = vmul.f32 %v518, %v556
  %v559 = vlaneseq
  %v560 = vshrl.u32 %v559, 7
  %v561 = vsub.s32 1, %v560
  %v562 = vrot.slane %v552, %v561
  %v563 = vadd.f32 %v557, %v562
  %v564 = vadd.f32 %v558, %v562
  %v565 = vmax.f32 %v563, 0.0
  %v566 = vmax.f32 %v564, 0.0
  %v567 = vpack.c.bf16 %v566, %v565
  %v576 = vunpack.c.l.b16 %v137
  %v577 = vunpack.c.l.b16 %v138
  %v578 = vunpack.c.l.b16 %v139
  %v579 = vunpack.c.l.b16 %v140
  %v580 = vunpack.c.l.b16 %v141
  %v581 = vunpack.c.l.b16 %v142
  %v582 = vunpack.c.l.b16 %v143
  %v583 = vunpack.c.l.b16 %v144
  %v584 = vpack.c.b16 %v577, %v576
  %v585 = vpack.c.b16 %v579, %v578
  %v586 = vpack.c.b16 %v581, %v580
  %v587 = vpack.c.b16 %v583, %v582
  %v593 = vsel %vm402, %v567, 0
  %595 = vmatprep.subr.bf16.mxu0 0
  %596 = vmatpush1.bf16.msra.mxu0 %v584
  %597 = vmatprep.subr.bf16.mxu0 0
  %598 = vmatpush1.bf16.msra.mxu0 %v585
  %599 = vmatprep.subr.bf16.mxu0 0
  %600 = vmatpush1.bf16.msra.mxu0 %v586
  %601 = vmatprep.subr.bf16.mxu0 0
  %602 = vmatpush1.bf16.msra.mxu0 %v587
  %603 = vmatprep.subr.bf16.mxu0 0
  %604 = vmatpush1.bf16.msra.mxu0 0
  %605 = vmatprep.subr.bf16.mxu0 0
  %606 = vmatpush1.bf16.msra.mxu0 0
  %607 = vmatprep.subr.bf16.mxu0 0
  %608 = vmatpush1.bf16.msra.mxu0 0
  %609 = vmatprep.subr.bf16.mxu0 0
  %610 = vmatpush1.bf16.msra.mxu0 0
  %611 = vmatprep.subr.bf16.mxu0 0
  %612 = vmatpush1.bf16.msra.mxu0 0
  %613 = vmatprep.subr.bf16.mxu0 0
  %614 = vmatpush1.bf16.msra.mxu0 0
  %615 = vmatprep.subr.bf16.mxu0 0
  %616 = vmatpush1.bf16.msra.mxu0 0
  %617 = vmatprep.subr.bf16.mxu0 0
  %618 = vmatpush1.bf16.msra.mxu0 0
  %619 = vmatprep.subr.bf16.mxu0 0
  %620 = vmatpush1.bf16.msra.mxu0 0
  %621 = vmatprep.subr.bf16.mxu0 0
  %622 = vmatpush1.bf16.msra.mxu0 0
  %623 = vmatprep.subr.bf16.mxu0 0
  %624 = vmatpush1.bf16.msra.mxu0 0
  %625 = vmatprep.subr.bf16.mxu0 0
  %626 = vmatpush1.bf16.msra.mxu0 0
  %627 = vmatprep.mubr.bf16.mxu0 0
  %628 = vmatmul.mubr.bf16.gmra.mrb[0].mxu0 %v593
  %v629 = vpop.f32.mrb[0].mxu0
  %v630 = vadd.f32 0.0, %v629
  %v631 = vpop.f32.mrb[0].mxu0
  %v632 = vpop.f32.mrb[0].mxu0
  %v633 = vadd.f32 0.0, %v632
  %v634 = vpop.f32.mrb[0].mxu0
  %635 = vdwg.mxu0
  %v636 = vsel %vm294, %v630, 0.0
  %v637 = vsel %vm294, %v633, 0.0
  %v638 = vadd.f32 %v636, %v637
  %v639 = vrot.slane %v638, 4
  %v640 = vadd.f32 %v638, %v639
  %v641 = vrot.slane %v640, 2
  %v642 = vadd.f32 %v640, %v641
  %v643 = vrot.slane %v642, 1
  %v644 = vadd.f32 %v642, %v643
  %v645 = vmul.f32 %v644, 0.0625
  %v646 = vmul.f32 %v630, %v630
  %v647 = vmul.f32 %v633, %v633
  %v648 = vsel %vm294, %v646, 0.0
  %v649 = vsel %vm294, %v647, 0.0
  %v650 = vadd.f32 %v648, %v649
  %v651 = vrot.slane %v650, 4
  %v652 = vadd.f32 %v650, %v651
  %v653 = vrot.slane %v652, 2
  %v654 = vadd.f32 %v652, %v653
  %v655 = vrot.slane %v654, 1
  %v656 = vadd.f32 %v654, %v655
  %v657 = vmul.f32 %v656, 0.0625
  %v658 = vmul.f32 %v645, %v645
  %v659 = vsub.f32 %v657, %v658
  %v660 = vadd.f32 %v659, 1e-05
  %v661 = vrsqrt.pop %v660
  %v662 = vmul.f32 %v169, %v661
  %v663 = vmul.f32 %v645, %v662
  %v665 = vrot.slane %v663, 7
  %v667 = vsub.f32 %v169, %v665
  %v668 = vlaneseq
  %v669 = vshrl.u32 %v668, 7
  %v670 = vsub.s32 6, %v669
  %v671 = vrot.slane %v662, %v670
  %v672 = vmul.f32 %v630, %v671
  %v673 = vmul.f32 %v633, %v671
  %v674 = vlaneseq
  %v675 = vshrl.u32 %v674, 7
  %v676 = vsub.s32 7, %v675
  %v677 = vrot.slane %v667, %v676
  %v678 = vadd.f32 %v672, %v677
  %v679 = vadd.f32 %v673, %v677
  %v680 = vmax.f32 %v678, 0.0
  %v681 = vmax.f32 %v679, 0.0
  %v682 = vpack.c.bf16 %v319, %v318
  %v683 = vpack.c.bf16 %v320, %v320
  %v690 = vunpack.c.l.b16 %v43
  %v691 = vunpack.c.l.b16 %v44
  %v692 = vunpack.c.l.b16 %v45
  %v693 = vunpack.c.l.b16 %v46
  %v694 = vunpack.c.l.b16 %v47
  %v695 = vunpack.c.l.b16 %v48
  %v696 = vpack.c.b16 %v691, %v690
  %v697 = vpack.c.b16 %v693, %v692
  %v698 = vpack.c.b16 %v695, %v694
  %vm699 = vcmask 179200
  %v701 = vsel %vm699, %v696, 0
  %v704 = vsel %vm699, %v697, 0
  %v707 = vsel %vm699, %v698, 0
  %vm709 = vcmask 1042432
  %v711 = vsel %vm709, %v683, 0
  %713 = vmatprep.subr.bf16.mxu0 0
  %714 = vmatpush1.bf16.msra.mxu0 %v682
  %715 = vmatprep.subr.bf16.mxu0 0
  %716 = vmatpush1.bf16.msra.mxu0 %v711
  %717 = vmatprep.subr.bf16.mxu0 0
  %718 = vmatpush1.bf16.msra.mxu0 0
  %719 = vmatprep.subr.bf16.mxu0 0
  %720 = vmatpush1.bf16.msra.mxu0 0
  %721 = vmatprep.subr.bf16.mxu0 0
  %722 = vmatpush1.bf16.msra.mxu0 0
  %723 = vmatprep.subr.bf16.mxu0 0
  %724 = vmatpush1.bf16.msra.mxu0 0
  %725 = vmatprep.subr.bf16.mxu0 0
  %726 = vmatpush1.bf16.msra.mxu0 0
  %727 = vmatprep.subr.bf16.mxu0 0
  %728 = vmatpush1.bf16.msra.mxu0 0
  %729 = vmatprep.subr.bf16.mxu0 0
  %730 = vmatpush1.bf16.msra.mxu0 0
  %731 = vmatprep.subr.bf16.mxu0 0
  %732 = vmatpush1.bf16.msra.mxu0 0
  %733 = vmatprep.subr.bf16.mxu0 0
  %734 = vmatpush1.bf16.msra.mxu0 0
  %735 = vmatprep.subr.bf16.mxu0 0
  %736 = vmatpush1.bf16.msra.mxu0 0
  %737 = vmatprep.subr.bf16.mxu0 0
  %738 = vmatpush1.bf16.msra.mxu0 0
  %739 = vmatprep.subr.bf16.mxu0 0
  %740 = vmatpush1.bf16.msra.mxu0 0
  %741 = vmatprep.subr.bf16.mxu0 0
  %742 = vmatpush1.bf16.msra.mxu0 0
  %743 = vmatprep.subr.bf16.mxu0 0
  %744 = vmatpush1.bf16.msra.mxu0 0
  %745 = vmatprep.mubr.bf16.mxu0 0
  %746 = vmatmul.mubr.bf16.gmra.mrb[0].mxu0 %v701
  %v747 = vpop.f32.mrb[0].mxu0
  %v748 = vadd.f32 0.0, %v747
  %v749 = vpop.f32.mrb[0].mxu0
  %v750 = vpop.f32.mrb[0].mxu0
  %v751 = vadd.f32 0.0, %v750
  %v752 = vpop.f32.mrb[0].mxu0
  %753 = vmatprep.mubr.bf16.mxu0 0
  %754 = vmatmul.mubr.bf16.gmra.mrb[0].mxu0 %v704
  %v755 = vpop.f32.mrb[0].mxu0
  %v756 = vadd.f32 0.0, %v755
  %v757 = vpop.f32.mrb[0].mxu0
  %v758 = vpop.f32.mrb[0].mxu0
  %v759 = vadd.f32 0.0, %v758
  %v760 = vpop.f32.mrb[0].mxu0
  %761 = vmatprep.mubr.bf16.mxu0 0
  %762 = vmatmul.mubr.bf16.gmra.mrb[0].mxu0 %v707
  %v763 = vpop.f32.mrb[0].mxu0
  %v764 = vadd.f32 0.0, %v763
  %v765 = vpop.f32.mrb[0].mxu0
  %v766 = vpop.f32.mrb[0].mxu0
  %v767 = vadd.f32 0.0, %v766
  %v768 = vpop.f32.mrb[0].mxu0
  %769 = vdwg.mxu0
  %v774 = vrot.slane %v756, 6
  %v775 = vrot.slane %v759, 6
  %v776 = vsel %vm301, %v774, %v775
  %v777 = vrot.slane %v764, 6
  %v778 = vsel %vm301, %v775, %v777
  %v779 = vrot.slane %v767, 6
  %v780 = vsel %vm301, %v777, %v779
  %781 = vrot.lane.b32.xlu0 %v776, 64
  %v782 = vpop.permute.xlu0 %781
  %783 = vrot.lane.b32.xlu0 %v778, 64
  %v784 = vpop.permute.xlu0 %783
  %785 = vrot.lane.b32.xlu0 %v780, 64
  %v786 = vpop.permute.xlu0 %785
  %v790 = vsel %vm402, %v748, %v782
  %v791 = vsel %vm402, %v751, %v784
  %v792 = vsel %vm402, %v756, %v786
  %v793 = vpack.c.bf16 %v791, %v790
  %v794 = vpack.c.bf16 %v27, %v26
  %v795 = vpack.c.bf16 %v792, %v792
  %v796 = vpack.c.bf16 %v28, %v28
  %v801 = vunpack.c.l.b16 %v49
  %v802 = vunpack.c.l.b16 %v50
  %v803 = vunpack.c.l.b16 %v51
  %v804 = vunpack.c.l.b16 %v52
  %v805 = vpack.c.b16 %v801, %v695
  %v806 = vpack.c.b16 %v803, %v802
  %v807 = vpack.c.b16 %v804, %v804
  %v808 = vrot.slane %v805, 2
  %v809 = vrot.slane %v806, 2
  %v810 = vsel %vm333, %v808, %v809
  %v811 = vrot.slane %v807, 2
  %v812 = vsel %vm333, %v809, %v811
  %v814 = vsel %vm699, %v810, 0
  %v817 = vsel %vm699, %v812, 0
  %v820 = vsel %vm709, %v795, 0
  %v823 = vsel %vm709, %v796, 0
  %825 = vmatprep.subr.bf16.mxu0 %v794
  %826 = vmatpush1.bf16.msra.mxu0 %v793
  %827 = vmatprep.subr.bf16.mxu0 %v823
  %828 = vmatpush1.bf16.msra.mxu0 %v820
  %829 = vmatprep.subr.bf16.mxu0 0
  %830 = vmatpush1.bf16.msra.mxu0 0
  %831 = vmatprep.subr.bf16.mxu0 0
  %832 = vmatpush1.bf16.msra.mxu0 0
  %833 = vmatprep.subr.bf16.mxu0 0
  %834 = vmatpush1.bf16.msra.mxu0 0
  %835 = vmatprep.subr.bf16.mxu0 0
  %836 = vmatpush1.bf16.msra.mxu0 0
  %837 = vmatprep.subr.bf16.mxu0 0
  %838 = vmatpush1.bf16.msra.mxu0 0
  %839 = vmatprep.subr.bf16.mxu0 0
  %840 = vmatpush1.bf16.msra.mxu0 0
  %841 = vmatprep.subr.bf16.mxu0 0
  %842 = vmatpush1.bf16.msra.mxu0 0
  %843 = vmatprep.subr.bf16.mxu0 0
  %844 = vmatpush1.bf16.msra.mxu0 0
  %845 = vmatprep.subr.bf16.mxu0 0
  %846 = vmatpush1.bf16.msra.mxu0 0
  %847 = vmatprep.subr.bf16.mxu0 0
  %848 = vmatpush1.bf16.msra.mxu0 0
  %849 = vmatprep.subr.bf16.mxu0 0
  %850 = vmatpush1.bf16.msra.mxu0 0
  %851 = vmatprep.subr.bf16.mxu0 0
  %852 = vmatpush1.bf16.msra.mxu0 0
  %853 = vmatprep.subr.bf16.mxu0 0
  %854 = vmatpush1.bf16.msra.mxu0 0
  %855 = vmatprep.subr.bf16.mxu0 0
  %856 = vmatpush1.bf16.msra.mxu0 0
  %857 = vmatprep.mubr.bf16.mxu0 0
  %858 = vmatmul.mubr.bf16.gmra.mrb[0].mxu0 %v814
  %v859 = vpop.f32.mrb[0].mxu0
  %v860 = vadd.f32 0.0, %v859
  %v861 = vpop.f32.mrb[0].mxu0
  %v862 = vadd.f32 0.0, %v861
  %v863 = vpop.f32.mrb[0].mxu0
  %v864 = vadd.f32 0.0, %v863
  %v865 = vpop.f32.mrb[0].mxu0
  %v866 = vadd.f32 0.0, %v865
  %867 = vmatprep.mubr.bf16.mxu0 0
  %868 = vmatmul.mubr.bf16.gmra.mrb[0].mxu0 %v817
  %v869 = vpop.f32.mrb[0].mxu0
  %v870 = vadd.f32 0.0, %v869
  %v871 = vpop.f32.mrb[0].mxu0
  %v872 = vadd.f32 0.0, %v871
  %v873 = vpop.f32.mrb[0].mxu0
  %v874 = vadd.f32 0.0, %v873
  %v875 = vpop.f32.mrb[0].mxu0
  %v876 = vadd.f32 0.0, %v875
  %877 = vdwg.mxu0
  %882 = vrot.lane.b32.xlu0 %v870, 32
  %v883 = vpop.permute.xlu0 %882
  %884 = vrot.lane.b32.xlu0 %v872, 32
  %v885 = vpop.permute.xlu0 %884
  %886 = vrot.lane.b32.xlu0 %v874, 32
  %v887 = vpop.permute.xlu0 %886
  %888 = vrot.lane.b32.xlu0 %v876, 32
  %v889 = vpop.permute.xlu0 %888
  %v890 = vsel %vm294, %v883, %v885
  %v891 = vsel %vm294, %v887, %v889
  %v894 = vsel %vm294, %v862, %v883
  %v895 = vsel %vm294, %v866, %v887
  %900 = vrot.lane.b32.xlu0 %v860, 32
  %v901 = vpop.permute.xlu0 %900
  %902 = vrot.lane.b32.xlu0 %v894, 32
  %v903 = vpop.permute.xlu0 %902
  %904 = vrot.lane.b32.xlu0 %v890, 32
  %v905 = vpop.permute.xlu0 %904
  %906 = vrot.lane.b32.xlu0 %v864, 32
  %v907 = vpop.permute.xlu0 %906
  %908 = vrot.lane.b32.xlu0 %v895, 32
  %v909 = vpop.permute.xlu0 %908
  %910 = vrot.lane.b32.xlu0 %v891, 32
  %v911 = vpop.permute.xlu0 %910
  %v912 = vsel %vm294, %v901, %v903
  %v913 = vsel %vm294, %v903, %v905
  %v914 = vsel %vm294, %v907, %v909
  %v915 = vsel %vm294, %v909, %v911
  %v922 = vsel %vm294, %v24, %v901
  %v923 = vsel %vm294, %v25, %v907
  %v924 = vpack.c.bf16 %v923, %v922
  %v925 = vpack.c.bf16 %v914, %v912
  %v926 = vpack.c.bf16 %v915, %v913
  %v971 = vunpack.c.l.b16 %v73
  %v972 = vunpack.c.l.b16 %v74
  %v973 = vunpack.c.l.b16 %v75
  %v974 = vunpack.c.l.b16 %v76
  %v975 = vunpack.c.l.b16 %v77
  %v976 = vunpack.c.l.b16 %v78
  %v977 = vunpack.c.l.b16 %v79
  %v978 = vunpack.c.l.b16 %v80
  %v979 = vunpack.c.l.b16 %v81
  %v980 = vunpack.c.l.b16 %v82
  %v981 = vunpack.c.l.b16 %v83
  %v982 = vunpack.c.l.b16 %v84
  %v983 = vunpack.c.l.b16 %v85
  %v984 = vunpack.c.l.b16 %v86
  %v985 = vunpack.c.l.b16 %v87
  %v986 = vunpack.c.l.b16 %v88
  %v987 = vunpack.c.l.b16 %v89
  %v988 = vunpack.c.l.b16 %v90
  %v989 = vunpack.c.l.b16 %v91
  %v990 = vunpack.c.l.b16 %v92
  %v991 = vunpack.c.l.b16 %v93
  %v992 = vunpack.c.l.b16 %v94
  %v993 = vunpack.c.l.b16 %v95
  %v994 = vunpack.c.l.b16 %v96
  %v995 = vunpack.c.l.b16 %v97
  %v996 = vunpack.c.l.b16 %v98
  %v997 = vunpack.c.l.b16 %v99
  %v998 = vunpack.c.l.b16 %v100
  %v999 = vunpack.c.l.b16 %v101
  %v1000 = vunpack.c.l.b16 %v102
  %v1001 = vunpack.c.l.b16 %v103
  %v1002 = vunpack.c.l.b16 %v104
  %v1003 = vunpack.c.l.b16 %v105
  %v1004 = vunpack.c.l.b16 %v106
  %v1005 = vunpack.c.l.b16 %v107
  %v1006 = vunpack.c.l.b16 %v108
  %v1007 = vunpack.c.l.b16 %v109
  %v1008 = vunpack.c.l.b16 %v110
  %v1009 = vunpack.c.l.b16 %v111
  %v1010 = vunpack.c.l.b16 %v112
  %v1011 = vunpack.c.l.b16 %v113
  %v1012 = vunpack.c.l.b16 %v114
  %v1013 = vunpack.c.l.b16 %v115
  %v1014 = vunpack.c.l.b16 %v116
  %v1015 = vpack.c.b16 %v972, %v971
  %v1016 = vpack.c.b16 %v974, %v973
  %v1017 = vpack.c.b16 %v976, %v975
  %v1018 = vpack.c.b16 %v978, %v977
  %v1019 = vpack.c.b16 %v980, %v979
  %v1020 = vpack.c.b16 %v982, %v981
  %v1021 = vpack.c.b16 %v984, %v983
  %v1022 = vpack.c.b16 %v986, %v985
  %v1023 = vpack.c.b16 %v988, %v987
  %v1024 = vpack.c.b16 %v990, %v989
  %v1025 = vpack.c.b16 %v992, %v991
  %v1026 = vpack.c.b16 %v994, %v993
  %v1027 = vpack.c.b16 %v996, %v995
  %v1028 = vpack.c.b16 %v998, %v997
  %v1029 = vpack.c.b16 %v1000, %v999
  %v1030 = vpack.c.b16 %v1002, %v1001
  %v1031 = vpack.c.b16 %v1004, %v1003
  %v1032 = vpack.c.b16 %v1006, %v1005
  %v1033 = vpack.c.b16 %v1008, %v1007
  %v1034 = vpack.c.b16 %v1010, %v1009
  %v1035 = vpack.c.b16 %v1012, %v1011
  %v1036 = vpack.c.b16 %v1014, %v1013
  %vm1059 = vcmask 785408
  %v1061 = vsel %vm1059, %v926, 0
  %1063 = vmatprep.subr.bf16.mxu0 0
  %1064 = vmatpush1.bf16.msra.mxu0 %v1015
  %1065 = vmatprep.subr.bf16.mxu0 0
  %1066 = vmatpush1.bf16.msra.mxu0 %v1016
  %1067 = vmatprep.subr.bf16.mxu0 0
  %1068 = vmatpush1.bf16.msra.mxu0 %v1017
  %1069 = vmatprep.subr.bf16.mxu0 0
  %1070 = vmatpush1.bf16.msra.mxu0 %v1018
  %1071 = vmatprep.subr.bf16.mxu0 0
  %1072 = vmatpush1.bf16.msra.mxu0 %v1019
  %1073 = vmatprep.subr.bf16.mxu0 0
  %1074 = vmatpush1.bf16.msra.mxu0 %v1020
  %1075 = vmatprep.subr.bf16.mxu0 0
  %1076 = vmatpush1.bf16.msra.mxu0 %v1021
  %1077 = vmatprep.subr.bf16.mxu0 0
  %1078 = vmatpush1.bf16.msra.mxu0 %v1022
  %1079 = vmatprep.subr.bf16.mxu0 0
  %1080 = vmatpush1.bf16.msra.mxu0 %v1023
  %1081 = vmatprep.subr.bf16.mxu0 0
  %1082 = vmatpush1.bf16.msra.mxu0 %v1024
  %1083 = vmatprep.subr.bf16.mxu0 0
  %1084 = vmatpush1.bf16.msra.mxu0 %v1025
  %1085 = vmatprep.subr.bf16.mxu0 0
  %1086 = vmatpush1.bf16.msra.mxu0 %v1026
  %1087 = vmatprep.subr.bf16.mxu0 0
  %1088 = vmatpush1.bf16.msra.mxu0 %v1027
  %1089 = vmatprep.subr.bf16.mxu0 0
  %1090 = vmatpush1.bf16.msra.mxu0 %v1028
  %1091 = vmatprep.subr.bf16.mxu0 0
  %1092 = vmatpush1.bf16.msra.mxu0 %v1029
  %1093 = vmatprep.subr.bf16.mxu0 0
  %1094 = vmatpush1.bf16.msra.mxu0 %v1030
  %1095 = vmatprep.mubr.bf16.mxu0 %v925
  %1096 = vmatmul.mubr.bf16.gmra.mrb[0].mxu0 %v924
  %v1097 = vpop.f32.mrb[0].mxu0
  %v1098 = vadd.f32 0.0, %v1097
  %v1099 = vpop.f32.mrb[0].mxu0
  %v1100 = vpop.f32.mrb[0].mxu0
  %v1101 = vadd.f32 0.0, %v1100
  %v1102 = vpop.f32.mrb[0].mxu0
  %1103 = vdwg.mxu0
  %1104 = vmatprep.subr.bf16.mxu0 0
  %1105 = vmatpush1.bf16.msra.mxu0 %v1031
  %1106 = vmatprep.subr.bf16.mxu0 0
  %1107 = vmatpush1.bf16.msra.mxu0 %v1032
  %1108 = vmatprep.subr.bf16.mxu0 0
  %1109 = vmatpush1.bf16.msra.mxu0 %v1033
  %1110 = vmatprep.subr.bf16.mxu0 0
  %1111 = vmatpush1.bf16.msra.mxu0 %v1034
  %1112 = vmatprep.subr.bf16.mxu0 0
  %1113 = vmatpush1.bf16.msra.mxu0 %v1035
  %1114 = vmatprep.subr.bf16.mxu0 0
  %1115 = vmatpush1.bf16.msra.mxu0 %v1036
  %1116 = vmatprep.subr.bf16.mxu0 0
  %1117 = vmatpush1.bf16.msra.mxu0 0
  %1118 = vmatprep.subr.bf16.mxu0 0
  %1119 = vmatpush1.bf16.msra.mxu0 0
  %1120 = vmatprep.subr.bf16.mxu0 0
  %1121 = vmatpush1.bf16.msra.mxu0 0
  %1122 = vmatprep.subr.bf16.mxu0 0
  %1123 = vmatpush1.bf16.msra.mxu0 0
  %1124 = vmatprep.subr.bf16.mxu0 0
  %1125 = vmatpush1.bf16.msra.mxu0 0
  %1126 = vmatprep.subr.bf16.mxu0 0
  %1127 = vmatpush1.bf16.msra.mxu0 0
  %1128 = vmatprep.subr.bf16.mxu0 0
  %1129 = vmatpush1.bf16.msra.mxu0 0
  %1130 = vmatprep.subr.bf16.mxu0 0
  %1131 = vmatpush1.bf16.msra.mxu0 0
  %1132 = vmatprep.subr.bf16.mxu0 0
  %1133 = vmatpush1.bf16.msra.mxu0 0
  %1134 = vmatprep.subr.bf16.mxu0 0
  %1135 = vmatpush1.bf16.msra.mxu0 0
  %1136 = vmatprep.mubr.bf16.mxu0 0
  %1137 = vmatmul.mubr.bf16.gmra.mrb[0].mxu0 %v1061
  %v1138 = vpop.f32.mrb[0].mxu0
  %v1139 = vadd.f32 %v1098, %v1138
  %v1140 = vpop.f32.mrb[0].mxu0
  %v1141 = vpop.f32.mrb[0].mxu0
  %v1142 = vadd.f32 %v1101, %v1141
  %v1143 = vpop.f32.mrb[0].mxu0
  %1144 = vdwg.mxu0
  %v1145 = vsel %vm402, %v1139, 0.0
  %v1146 = vsel %vm402, %v1142, 0.0
  %v1147 = vadd.f32 %v1145, %v1146
  %v1148 = vrot.slane %v1147, 4
  %v1149 = vadd.f32 %v1147, %v1148
  %v1150 = vrot.slane %v1149, 2
  %v1151 = vadd.f32 %v1149, %v1150
  %v1152 = vrot.slane %v1151, 1
  %v1153 = vadd.f32 %v1151, %v1152
  %v1154 = vmul.f32 %v1153, 0.0625
  %v1155 = vmul.f32 %v1139, %v1139
  %v1156 = vmul.f32 %v1142, %v1142
  %v1157 = vsel %vm402, %v1155, 0.0
  %v1158 = vsel %vm402, %v1156, 0.0
  %v1159 = vadd.f32 %v1157, %v1158
  %v1160 = vrot.slane %v1159, 4
  %v1161 = vadd.f32 %v1159, %v1160
  %v1162 = vrot.slane %v1161, 2
  %v1163 = vadd.f32 %v1161, %v1162
  %v1164 = vrot.slane %v1163, 1
  %v1165 = vadd.f32 %v1163, %v1164
  %v1166 = vmul.f32 %v1165, 0.0625
  %v1167 = vmul.f32 %v1154, %v1154
  %v1168 = vsub.f32 %v1166, %v1167
  %v1169 = vadd.f32 %v1168, 1e-05
  %v1170 = vrsqrt.pop %v1169
  %v1171 = vmul.f32 %v169, %v1170
  %v1172 = vmul.f32 %v1154, %v1171
  %v1174 = vrot.slane %v1172, 7
  %v1176 = vsub.f32 %v169, %v1174
  %v1177 = vlaneseq
  %v1178 = vshrl.u32 %v1177, 7
  %v1179 = vsub.s32 2, %v1178
  %v1180 = vrot.slane %v1171, %v1179
  %v1181 = vmul.f32 %v1139, %v1180
  %v1182 = vmul.f32 %v1142, %v1180
  %v1183 = vlaneseq
  %v1184 = vshrl.u32 %v1183, 7
  %v1185 = vsub.s32 3, %v1184
  %v1186 = vrot.slane %v1176, %v1185
  %v1187 = vadd.f32 %v1181, %v1186
  %v1188 = vadd.f32 %v1182, %v1186
  %v1189 = vmax.f32 %v1187, 0.0
  %v1190 = vmax.f32 %v1188, 0.0
  %v1191 = vpack.c.bf16 %v1190, %v1189
  %v1200 = vunpack.c.l.b16 %v145
  %v1201 = vunpack.c.l.b16 %v146
  %v1202 = vunpack.c.l.b16 %v147
  %v1203 = vunpack.c.l.b16 %v148
  %v1204 = vunpack.c.l.b16 %v149
  %v1205 = vunpack.c.l.b16 %v150
  %v1206 = vunpack.c.l.b16 %v151
  %v1207 = vunpack.c.l.b16 %v152
  %v1208 = vpack.c.b16 %v1201, %v1200
  %v1209 = vpack.c.b16 %v1203, %v1202
  %v1210 = vpack.c.b16 %v1205, %v1204
  %v1211 = vpack.c.b16 %v1207, %v1206
  %v1217 = vsel %vm402, %v1191, 0
  %1219 = vmatprep.subr.bf16.mxu0 0
  %1220 = vmatpush1.bf16.msra.mxu0 %v1208
  %1221 = vmatprep.subr.bf16.mxu0 0
  %1222 = vmatpush1.bf16.msra.mxu0 %v1209
  %1223 = vmatprep.subr.bf16.mxu0 0
  %1224 = vmatpush1.bf16.msra.mxu0 %v1210
  %1225 = vmatprep.subr.bf16.mxu0 0
  %1226 = vmatpush1.bf16.msra.mxu0 %v1211
  %1227 = vmatprep.subr.bf16.mxu0 0
  %1228 = vmatpush1.bf16.msra.mxu0 0
  %1229 = vmatprep.subr.bf16.mxu0 0
  %1230 = vmatpush1.bf16.msra.mxu0 0
  %1231 = vmatprep.subr.bf16.mxu0 0
  %1232 = vmatpush1.bf16.msra.mxu0 0
  %1233 = vmatprep.subr.bf16.mxu0 0
  %1234 = vmatpush1.bf16.msra.mxu0 0
  %1235 = vmatprep.subr.bf16.mxu0 0
  %1236 = vmatpush1.bf16.msra.mxu0 0
  %1237 = vmatprep.subr.bf16.mxu0 0
  %1238 = vmatpush1.bf16.msra.mxu0 0
  %1239 = vmatprep.subr.bf16.mxu0 0
  %1240 = vmatpush1.bf16.msra.mxu0 0
  %1241 = vmatprep.subr.bf16.mxu0 0
  %1242 = vmatpush1.bf16.msra.mxu0 0
  %1243 = vmatprep.subr.bf16.mxu0 0
  %1244 = vmatpush1.bf16.msra.mxu0 0
  %1245 = vmatprep.subr.bf16.mxu0 0
  %1246 = vmatpush1.bf16.msra.mxu0 0
  %1247 = vmatprep.subr.bf16.mxu0 0
  %1248 = vmatpush1.bf16.msra.mxu0 0
  %1249 = vmatprep.subr.bf16.mxu0 0
  %1250 = vmatpush1.bf16.msra.mxu0 0
  %1251 = vmatprep.mubr.bf16.mxu0 0
  %1252 = vmatmul.mubr.bf16.gmra.mrb[0].mxu0 %v1217
  %v1253 = vpop.f32.mrb[0].mxu0
  %v1254 = vadd.f32 0.0, %v1253
  %v1255 = vpop.f32.mrb[0].mxu0
  %v1256 = vpop.f32.mrb[0].mxu0
  %v1257 = vadd.f32 0.0, %v1256
  %v1258 = vpop.f32.mrb[0].mxu0
  %1259 = vdwg.mxu0
  %v1260 = vsel %vm294, %v1254, 0.0
  %v1261 = vsel %vm294, %v1257, 0.0
  %v1262 = vadd.f32 %v1260, %v1261
  %v1263 = vrot.slane %v1262, 4
  %v1264 = vadd.f32 %v1262, %v1263
  %v1265 = vrot.slane %v1264, 2
  %v1266 = vadd.f32 %v1264, %v1265
  %v1267 = vrot.slane %v1266, 1
  %v1268 = vadd.f32 %v1266, %v1267
  %v1269 = vmul.f32 %v1268, 0.0625
  %v1270 = vmul.f32 %v1254, %v1254
  %v1271 = vmul.f32 %v1257, %v1257
  %v1272 = vsel %vm294, %v1270, 0.0
  %v1273 = vsel %vm294, %v1271, 0.0
  %v1274 = vadd.f32 %v1272, %v1273
  %v1275 = vrot.slane %v1274, 4
  %v1276 = vadd.f32 %v1274, %v1275
  %v1277 = vrot.slane %v1276, 2
  %v1278 = vadd.f32 %v1276, %v1277
  %v1279 = vrot.slane %v1278, 1
  %v1280 = vadd.f32 %v1278, %v1279
  %v1281 = vmul.f32 %v1280, 0.0625
  %v1282 = vmul.f32 %v1269, %v1269
  %v1283 = vsub.f32 %v1281, %v1282
  %v1284 = vadd.f32 %v1283, 1e-05
  %v1285 = vrsqrt.pop %v1284
  %v1286 = vmul.f32 %v170, %v1285
  %v1287 = vmul.f32 %v1269, %v1286
  %v1289 = vrot.slane %v1287, 7
  %v1291 = vsub.f32 %v170, %v1289
  %v1292 = vlaneseq
  %v1293 = vshrl.u32 %v1292, 7
  %v1294 = vsub.s32 0, %v1293
  %v1295 = vrot.slane %v1286, %v1294
  %v1296 = vmul.f32 %v1254, %v1295
  %v1297 = vmul.f32 %v1257, %v1295
  %v1298 = vlaneseq
  %v1299 = vshrl.u32 %v1298, 7
  %v1300 = vsub.s32 1, %v1299
  %v1301 = vrot.slane %v1291, %v1300
  %v1302 = vadd.f32 %v1296, %v1301
  %v1303 = vadd.f32 %v1297, %v1301
  %v1304 = vmax.f32 %v1302, 0.0
  %v1305 = vmax.f32 %v1303, 0.0
  %v1326 = vunpack.c.l.b16 %v117
  %v1327 = vunpack.c.l.b16 %v118
  %v1328 = vunpack.c.l.b16 %v119
  %v1329 = vunpack.c.l.b16 %v120
  %v1330 = vunpack.c.l.b16 %v121
  %v1331 = vunpack.c.l.b16 %v122
  %v1332 = vunpack.c.l.b16 %v123
  %v1333 = vunpack.c.l.b16 %v124
  %v1334 = vunpack.c.l.b16 %v125
  %v1335 = vunpack.c.l.b16 %v126
  %v1336 = vunpack.c.l.b16 %v127
  %v1337 = vunpack.c.l.b16 %v128
  %v1338 = vunpack.c.l.b16 %v129
  %v1339 = vunpack.c.l.b16 %v130
  %v1340 = vunpack.c.l.b16 %v131
  %v1341 = vunpack.c.l.b16 %v132
  %v1342 = vunpack.c.l.b16 %v133
  %v1343 = vunpack.c.l.b16 %v134
  %v1344 = vunpack.c.l.b16 %v135
  %v1345 = vunpack.c.l.b16 %v136
  %v1346 = vpack.c.b16 %v1327, %v1326
  %v1347 = vpack.c.b16 %v1329, %v1328
  %v1348 = vpack.c.b16 %v1331, %v1330
  %v1349 = vpack.c.b16 %v1333, %v1332
  %v1350 = vpack.c.b16 %v1335, %v1334
  %v1351 = vpack.c.b16 %v1337, %v1336
  %v1352 = vpack.c.b16 %v1339, %v1338
  %v1353 = vpack.c.b16 %v1341, %v1340
  %v1354 = vpack.c.b16 %v1343, %v1342
  %v1355 = vpack.c.b16 %v1345, %v1344
  %v1367 = vsel %vm294, %v794, 0
  %v1369 = vsel %vm294, %v796, 0
  %1371 = vmatprep.subr.bf16.mxu0 0
  %1372 = vmatpush1.bf16.msra.mxu0 %v1346
  %1373 = vmatprep.subr.bf16.mxu0 0
  %1374 = vmatpush1.bf16.msra.mxu0 %v1347
  %1375 = vmatprep.subr.bf16.mxu0 0
  %1376 = vmatpush1.bf16.msra.mxu0 %v1348
  %1377 = vmatprep.subr.bf16.mxu0 0
  %1378 = vmatpush1.bf16.msra.mxu0 %v1349
  %1379 = vmatprep.subr.bf16.mxu0 0
  %1380 = vmatpush1.bf16.msra.mxu0 %v1350
  %1381 = vmatprep.subr.bf16.mxu0 0
  %1382 = vmatpush1.bf16.msra.mxu0 %v1351
  %1383 = vmatprep.subr.bf16.mxu0 0
  %1384 = vmatpush1.bf16.msra.mxu0 %v1352
  %1385 = vmatprep.subr.bf16.mxu0 0
  %1386 = vmatpush1.bf16.msra.mxu0 %v1353
  %1387 = vmatprep.subr.bf16.mxu0 0
  %1388 = vmatpush1.bf16.msra.mxu0 %v1354
  %1389 = vmatprep.subr.bf16.mxu0 0
  %1390 = vmatpush1.bf16.msra.mxu0 %v1355
  %1391 = vmatprep.subr.bf16.mxu0 0
  %1392 = vmatpush1.bf16.msra.mxu0 0
  %1393 = vmatprep.subr.bf16.mxu0 0
  %1394 = vmatpush1.bf16.msra.mxu0 0
  %1395 = vmatprep.subr.bf16.mxu0 0
  %1396 = vmatpush1.bf16.msra.mxu0 0
  %1397 = vmatprep.subr.bf16.mxu0 0
  %1398 = vmatpush1.bf16.msra.mxu0 0
  %1399 = vmatprep.subr.bf16.mxu0 0
  %1400 = vmatpush1.bf16.msra.mxu0 0
  %1401 = vmatprep.subr.bf16.mxu0 0
  %1402 = vmatpush1.bf16.msra.mxu0 0
  %1403 = vmatprep.mubr.bf16.mxu0 %v1367
  %1404 = vmatmul.mubr.bf16.gmra.mrb[0].mxu0 %v793
  %v1405 = vpop.f32.mrb[0].mxu0
  %v1406 = vadd.f32 0.0, %v1405
  %v1407 = vpop.f32.mrb[0].mxu0
  %v1408 = vpop.f32.mrb[0].mxu0
  %v1409 = vadd.f32 0.0, %v1408
  %v1410 = vpop.f32.mrb[0].mxu0
  %1411 = vmatprep.mubr.bf16.mxu0 %v1369
  %1412 = vmatmul.mubr.bf16.gmra.mrb[0].mxu0 %v795
  %v1413 = vpop.f32.mrb[0].mxu0
  %v1414 = vadd.f32 0.0, %v1413
  %v1415 = vpop.f32.mrb[0].mxu0
  %v1416 = vpop.f32.mrb[0].mxu0
  %v1417 = vpop.f32.mrb[0].mxu0
  %1418 = vdwg.mxu0
  %v1419 = vlaneseq
  %v1420 = vshrl.u32 %v1419, 7
  %v1421 = vadd.s32 %v1420, 8
  %v1422 = vadd.s32 %v1420, 16
  %vm1423 = vcmp.lt.s32.totalorder %v1420, 10
  %vm1424 = vcmp.lt.s32.totalorder %v1421, 10
  %vm1425 = vcmp.lt.s32.totalorder %v1422, 10
  %v1426 = vsel %vm1423, 1, 0
  %v1427 = vsel %vm1424, 1, 0
  %v1428 = vsel %vm1425, 1, 0
  %v1429 = vcvt.s32.f32 %v1426
  %v1430 = vcvt.s32.f32 %v1427
  %v1431 = vcvt.s32.f32 %v1428
  %v1432 = vsub.f32 1.0, %v1429
  %v1433 = vsub.f32 1.0, %v1430
  %v1434 = vsub.f32 1.0, %v1431
  %v1435 = vmul.f32 %v1406, %v1406
  %v1436 = vmul.f32 %v1409, %v1409
  %v1437 = vmul.f32 %v1414, %v1414
  %v1438 = vsel %vm402, %v1406, 0.0
  %v1439 = vsel %vm402, %v1409, 0.0
  %v1440 = vadd.f32 %v1438, %v1439
  %vm1441 = vcmask 521216
  %v1442 = vsel %vm1441, %v1414, 0.0
  %v1443 = vadd.f32 %v1440, %v1442
  %v1444 = vrot.slane %v1443, 4
  %v1445 = vadd.f32 %v1443, %v1444
  %v1446 = vrot.slane %v1445, 2
  %v1447 = vadd.f32 %v1445, %v1446
  %v1448 = vrot.slane %v1447, 1
  %v1449 = vadd.f32 %v1447, %v1448
  %v1450 = vsel %vm402, %v1435, 0.0
  %v1451 = vsel %vm402, %v1436, 0.0
  %v1452 = vadd.f32 %v1450, %v1451
  %v1453 = vsel %vm1441, %v1437, 0.0
  %v1454 = vadd.f32 %v1452, %v1453
  %v1455 = vrot.slane %v1454, 4
  %v1456 = vadd.f32 %v1454, %v1455
  %v1457 = vrot.slane %v1456, 2
  %v1458 = vadd.f32 %v1456, %v1457
  %v1459 = vrot.slane %v1458, 1
  %v1460 = vadd.f32 %v1458, %v1459
  %v1461 = vmul.f32 %v1406, %v1429
  %v1462 = vmul.f32 %v1409, %v1430
  %v1463 = vmul.f32 %v1414, %v1431
  %v1464 = vsel %vm402, %v1461, 0.0
  %v1465 = vsel %vm402, %v1462, 0.0
  %v1466 = vadd.f32 %v1464, %v1465
  %v1467 = vsel %vm1441, %v1463, 0.0
  %v1468 = vadd.f32 %v1466, %v1467
  %v1469 = vrot.slane %v1468, 4
  %v1470 = vadd.f32 %v1468, %v1469
  %v1471 = vrot.slane %v1470, 2
  %v1472 = vadd.f32 %v1470, %v1471
  %v1473 = vrot.slane %v1472, 1
  %v1474 = vadd.f32 %v1472, %v1473
  %v1475 = vmul.f32 %v1435, %v1429
  %v1476 = vmul.f32 %v1436, %v1430
  %v1477 = vmul.f32 %v1437, %v1431
  %v1478 = vsel %vm402, %v1475, 0.0
  %v1479 = vsel %vm402, %v1476, 0.0
  %v1480 = vadd.f32 %v1478, %v1479
  %v1481 = vsel %vm1441, %v1477, 0.0
  %v1482 = vadd.f32 %v1480, %v1481
  %v1483 = vrot.slane %v1482, 4
  %v1484 = vadd.f32 %v1482, %v1483
  %v1485 = vrot.slane %v1484, 2
  %v1486 = vadd.f32 %v1484, %v1485
  %v1487 = vrot.slane %v1486, 1
  %v1488 = vadd.f32 %v1486, %v1487
  %v1489 = vmul.f32 %v1474, 0.1
  %v1490 = vsub.f32 %v1449, %v1474
  %v1491 = vmul.f32 %v1490, 0.083333336
  %v1492 = vmul.f32 %v1488, 0.1
  %v1493 = vmul.f32 %v1489, %v1489
  %v1494 = vsub.f32 %v1492, %v1493
  %v1495 = vsub.f32 %v1460, %v1488
  %v1496 = vmul.f32 %v1495, 0.083333336
  %v1497 = vmul.f32 %v1491, %v1491
  %v1498 = vsub.f32 %v1496, %v1497
  %v1499 = vadd.f32 %v1494, 1e-05
  %v1500 = vrsqrt.pop %v1499
  %v1501 = vmul.f32 %v169, %v1500
  %v1502 = vadd.f32 %v1498, 1e-05
  %v1503 = vrsqrt.pop %v1502
  %v1504 = vmul.f32 %v169, %v1503
  %v1505 = vmul.f32 %v1489, %v1501
  %v1507 = vrot.slane %v1505, 7
  %v1509 = vsub.f32 %v169, %v1507
  %v1510 = vmul.f32 %v1491, %v1504
  %v1512 = vrot.slane %v1510, 7
  %v1514 = vsub.f32 %v169, %v1512
  %v1515 = vlaneseq
  %v1516 = vshrl.u32 %v1515, 7
  %v1517 = vsub.s32 4, %v1516
  %v1518 = vrot.slane %v1501, %v1517
  %v1519 = vmul.f32 %v1429, %v1518
  %v1520 = vmul.f32 %v1430, %v1518
  %v1521 = vmul.f32 %v1431, %v1518
  %v1522 = vlaneseq
  %v1523 = vshrl.u32 %v1522, 7
  %v1524 = vsub.s32 4, %v1523
  %v1525 = vrot.slane %v1504, %v1524
  %v1526 = vmul.f32 %v1432, %v1525
  %v1527 = vmul.f32 %v1433, %v1525
  %v1528 = vmul.f32 %v1434, %v1525
  %v1529 = vadd.f32 %v1519, %v1526
  %v1530 = vadd.f32 %v1520, %v1527
  %v1531 = vadd.f32 %v1521, %v1528
  %v1532 = vlaneseq
  %v1533 = vshrl.u32 %v1532, 7
  %v1534 = vsub.s32 5, %v1533
  %v1535 = vrot.slane %v1509, %v1534
  %v1536 = vmul.f32 %v1429, %v1535
  %v1537 = vmul.f32 %v1430, %v1535
  %v1538 = vmul.f32 %v1431, %v1535
  %v1539 = vlaneseq
  %v1540 = vshrl.u32 %v1539, 7
  %v1541 = vsub.s32 5, %v1540
  %v1542 = vrot.slane %v1514, %v1541
  %v1543 = vmul.f32 %v1432, %v1542
  %v1544 = vmul.f32 %v1433, %v1542
  %v1545 = vmul.f32 %v1434, %v1542
  %v1546 = vadd.f32 %v1536, %v1543
  %v1547 = vadd.f32 %v1537, %v1544
  %v1548 = vadd.f32 %v1538, %v1545
  %v1549 = vmul.f32 %v1406, %v1529
  %v1550 = vmul.f32 %v1409, %v1530
  %v1551 = vmul.f32 %v1414, %v1531
  %v1552 = vadd.f32 %v1549, %v1546
  %v1553 = vadd.f32 %v1550, %v1547
  %v1554 = vadd.f32 %v1551, %v1548
  %v1555 = vmax.f32 %v1552, 0.0
  %v1556 = vmax.f32 %v1553, 0.0
  %v1557 = vmax.f32 %v1554, 0.0
  %v1558 = vpack.c.bf16 %v1556, %v1555
  %v1559 = vpack.c.bf16 %v1557, %v1557
  %v1568 = vunpack.c.l.b16 %v153
  %v1569 = vunpack.c.l.b16 %v154
  %v1570 = vunpack.c.l.b16 %v155
  %v1571 = vunpack.c.l.b16 %v156
  %v1572 = vunpack.c.l.b16 %v157
  %v1573 = vunpack.c.l.b16 %v158
  %v1574 = vunpack.c.l.b16 %v159
  %v1575 = vunpack.c.l.b16 %v160
  %v1576 = vpack.c.b16 %v1569, %v1568
  %v1577 = vpack.c.b16 %v1571, %v1570
  %v1578 = vpack.c.b16 %v1573, %v1572
  %v1579 = vpack.c.b16 %v1575, %v1574
  %v1585 = vsel %vm402, %v1558, 0
  %v1588 = vsel %vm402, %v1559, 0
  %1590 = vmatprep.subr.bf16.mxu0 0
  %1591 = vmatpush1.bf16.msra.mxu0 %v1576
  %1592 = vmatprep.subr.bf16.mxu0 0
  %1593 = vmatpush1.bf16.msra.mxu0 %v1577
  %1594 = vmatprep.subr.bf16.mxu0 0
  %1595 = vmatpush1.bf16.msra.mxu0 %v1578
  %1596 = vmatprep.subr.bf16.mxu0 0
  %1597 = vmatpush1.bf16.msra.mxu0 %v1579
  %1598 = vmatprep.subr.bf16.mxu0 0
  %1599 = vmatpush1.bf16.msra.mxu0 0
  %1600 = vmatprep.subr.bf16.mxu0 0
  %1601 = vmatpush1.bf16.msra.mxu0 0
  %1602 = vmatprep.subr.bf16.mxu0 0
  %1603 = vmatpush1.bf16.msra.mxu0 0
  %1604 = vmatprep.subr.bf16.mxu0 0
  %1605 = vmatpush1.bf16.msra.mxu0 0
  %1606 = vmatprep.subr.bf16.mxu0 0
  %1607 = vmatpush1.bf16.msra.mxu0 0
  %1608 = vmatprep.subr.bf16.mxu0 0
  %1609 = vmatpush1.bf16.msra.mxu0 0
  %1610 = vmatprep.subr.bf16.mxu0 0
  %1611 = vmatpush1.bf16.msra.mxu0 0
  %1612 = vmatprep.subr.bf16.mxu0 0
  %1613 = vmatpush1.bf16.msra.mxu0 0
  %1614 = vmatprep.subr.bf16.mxu0 0
  %1615 = vmatpush1.bf16.msra.mxu0 0
  %1616 = vmatprep.subr.bf16.mxu0 0
  %1617 = vmatpush1.bf16.msra.mxu0 0
  %1618 = vmatprep.subr.bf16.mxu0 0
  %1619 = vmatpush1.bf16.msra.mxu0 0
  %1620 = vmatprep.subr.bf16.mxu0 0
  %1621 = vmatpush1.bf16.msra.mxu0 0
  %1622 = vmatprep.mubr.bf16.mxu0 0
  %1623 = vmatmul.mubr.bf16.gmra.mrb[0].mxu0 %v1585
  %v1624 = vpop.f32.mrb[0].mxu0
  %v1625 = vadd.f32 0.0, %v1624
  %v1626 = vpop.f32.mrb[0].mxu0
  %v1627 = vpop.f32.mrb[0].mxu0
  %v1628 = vadd.f32 0.0, %v1627
  %v1629 = vpop.f32.mrb[0].mxu0
  %1630 = vmatprep.mubr.bf16.mxu0 0
  %1631 = vmatmul.mubr.bf16.gmra.mrb[0].mxu0 %v1588
  %v1632 = vpop.f32.mrb[0].mxu0
  %v1633 = vadd.f32 0.0, %v1632
  %v1634 = vpop.f32.mrb[0].mxu0
  %v1635 = vpop.f32.mrb[0].mxu0
  %v1636 = vpop.f32.mrb[0].mxu0
  %1637 = vdwg.mxu0
  %v1638 = vmul.f32 %v1625, %v1625
  %v1639 = vmul.f32 %v1628, %v1628
  %v1640 = vmul.f32 %v1633, %v1633
  %v1641 = vsel %vm294, %v1625, 0.0
  %v1642 = vsel %vm294, %v1628, 0.0
  %v1643 = vadd.f32 %v1641, %v1642
  %vm1644 = vcmask 259072
  %v1645 = vsel %vm1644, %v1633, 0.0
  %v1646 = vadd.f32 %v1643, %v1645
  %v1647 = vrot.slane %v1646, 4
  %v1648 = vadd.f32 %v1646, %v1647
  %v1649 = vrot.slane %v1648, 2
  %v1650 = vadd.f32 %v1648, %v1649
  %v1651 = vrot.slane %v1650, 1
  %v1652 = vadd.f32 %v1650, %v1651
  %v1653 = vsel %vm294, %v1638, 0.0
  %v1654 = vsel %vm294, %v1639, 0.0
  %v1655 = vadd.f32 %v1653, %v1654
  %v1656 = vsel %vm1644, %v1640, 0.0
  %v1657 = vadd.f32 %v1655, %v1656
  %v1658 = vrot.slane %v1657, 4
  %v1659 = vadd.f32 %v1657, %v1658
  %v1660 = vrot.slane %v1659, 2
  %v1661 = vadd.f32 %v1659, %v1660
  %v1662 = vrot.slane %v1661, 1
  %v1663 = vadd.f32 %v1661, %v1662
  %v1664 = vmul.f32 %v1625, %v1429
  %v1665 = vmul.f32 %v1628, %v1430
  %v1666 = vmul.f32 %v1633, %v1431
  %v1667 = vsel %vm294, %v1664, 0.0
  %v1668 = vsel %vm294, %v1665, 0.0
  %v1669 = vadd.f32 %v1667, %v1668
  %v1670 = vsel %vm1644, %v1666, 0.0
  %v1671 = vadd.f32 %v1669, %v1670
  %v1672 = vrot.slane %v1671, 4
  %v1673 = vadd.f32 %v1671, %v1672
  %v1674 = vrot.slane %v1673, 2
  %v1675 = vadd.f32 %v1673, %v1674
  %v1676 = vrot.slane %v1675, 1
  %v1677 = vadd.f32 %v1675, %v1676
  %v1678 = vmul.f32 %v1638, %v1429
  %v1679 = vmul.f32 %v1639, %v1430
  %v1680 = vmul.f32 %v1640, %v1431
  %v1681 = vsel %vm294, %v1678, 0.0
  %v1682 = vsel %vm294, %v1679, 0.0
  %v1683 = vadd.f32 %v1681, %v1682
  %v1684 = vsel %vm1644, %v1680, 0.0
  %v1685 = vadd.f32 %v1683, %v1684
  %v1686 = vrot.slane %v1685, 4
  %v1687 = vadd.f32 %v1685, %v1686
  %v1688 = vrot.slane %v1687, 2
  %v1689 = vadd.f32 %v1687, %v1688
  %v1690 = vrot.slane %v1689, 1
  %v1691 = vadd.f32 %v1689, %v1690
  %v1692 = vmul.f32 %v1677, 0.1
  %v1693 = vsub.f32 %v1652, %v1677
  %v1694 = vmul.f32 %v1693, 0.083333336
  %v1695 = vmul.f32 %v1691, 0.1
  %v1696 = vmul.f32 %v1692, %v1692
  %v1697 = vsub.f32 %v1695, %v1696
  %v1698 = vsub.f32 %v1663, %v1691
  %v1699 = vmul.f32 %v1698, 0.083333336
  %v1700 = vmul.f32 %v1694, %v1694
  %v1701 = vsub.f32 %v1699, %v1700
  %v1702 = vadd.f32 %v1697, 1e-05
  %v1703 = vrsqrt.pop %v1702
  %v1704 = vmul.f32 %v170, %v1703
  %v1705 = vadd.f32 %v1701, 1e-05
  %v1706 = vrsqrt.pop %v1705
  %v1707 = vmul.f32 %v170, %v1706
  %v1708 = vmul.f32 %v1692, %v1704
  %v1710 = vrot.slane %v1708, 7
  %v1712 = vsub.f32 %v170, %v1710
  %v1713 = vmul.f32 %v1694, %v1707
  %v1715 = vrot.slane %v1713, 7
  %v1717 = vsub.f32 %v170, %v1715
  %v1718 = vlaneseq
  %v1719 = vshrl.u32 %v1718, 7
  %v1720 = vsub.s32 2, %v1719
  %v1721 = vrot.slane %v1704, %v1720
  %v1722 = vmul.f32 %v1429, %v1721
  %v1723 = vmul.f32 %v1430, %v1721
  %v1724 = vmul.f32 %v1431, %v1721
  %v1725 = vlaneseq
  %v1726 = vshrl.u32 %v1725, 7
  %v1727 = vsub.s32 2, %v1726
  %v1728 = vrot.slane %v1707, %v1727
  %v1729 = vmul.f32 %v1432, %v1728
  %v1730 = vmul.f32 %v1433, %v1728
  %v1731 = vmul.f32 %v1434, %v1728
  %v1732 = vadd.f32 %v1722, %v1729
  %v1733 = vadd.f32 %v1723, %v1730
  %v1734 = vadd.f32 %v1724, %v1731
  %v1735 = vlaneseq
  %v1736 = vshrl.u32 %v1735, 7
  %v1737 = vsub.s32 3, %v1736
  %v1738 = vrot.slane %v1712, %v1737
  %v1739 = vmul.f32 %v1429, %v1738
  %v1740 = vmul.f32 %v1430, %v1738
  %v1741 = vmul.f32 %v1431, %v1738
  %v1742 = vlaneseq
  %v1743 = vshrl.u32 %v1742, 7
  %v1744 = vsub.s32 3, %v1743
  %v1745 = vrot.slane %v1717, %v1744
  %v1746 = vmul.f32 %v1432, %v1745
  %v1747 = vmul.f32 %v1433, %v1745
  %v1748 = vmul.f32 %v1434, %v1745
  %v1749 = vadd.f32 %v1739, %v1746
  %v1750 = vadd.f32 %v1740, %v1747
  %v1751 = vadd.f32 %v1741, %v1748
  %v1752 = vmul.f32 %v1625, %v1732
  %v1753 = vmul.f32 %v1628, %v1733
  %v1754 = vmul.f32 %v1633, %v1734
  %v1755 = vadd.f32 %v1752, %v1749
  %v1756 = vadd.f32 %v1753, %v1750
  %v1757 = vadd.f32 %v1754, %v1751
  %v1758 = vmax.f32 %v1755, 0.0
  %v1759 = vmax.f32 %v1756, 0.0
  %v1760 = vmax.f32 %v1757, 0.0
  %1763 = vrot.lane.b32.xlu0 %v1304, 32
  %v1764 = vpop.permute.xlu0 %1763
  %1765 = vrot.lane.b32.xlu0 %v1305, 32
  %v1766 = vpop.permute.xlu0 %1765
  %v1769 = vsel %vm294, %v680, %v1764
  %v1770 = vsel %vm294, %v681, %v1766
  %v1771 = vpack.c.bf16 %v1770, %v1769
  %v1780 = vunpack.c.l.b16 %v161
  %v1781 = vunpack.c.l.b16 %v162
  %v1782 = vunpack.c.l.b16 %v163
  %v1783 = vunpack.c.l.b16 %v164
  %v1784 = vunpack.c.l.b16 %v165
  %v1785 = vunpack.c.l.b16 %v166
  %v1786 = vunpack.c.l.b16 %v167
  %v1787 = vunpack.c.l.b16 %v168
  %v1788 = vpack.c.b16 %v1781, %v1780
  %v1789 = vpack.c.b16 %v1783, %v1782
  %v1790 = vpack.c.b16 %v1785, %v1784
  %v1791 = vpack.c.b16 %v1787, %v1786
  %v1797 = vsel %vm402, %v1771, 0
  %1799 = vmatprep.subr.bf16.mxu0 0
  %1800 = vmatpush1.bf16.msra.mxu0 %v1788
  %1801 = vmatprep.subr.bf16.mxu0 0
  %1802 = vmatpush1.bf16.msra.mxu0 %v1789
  %1803 = vmatprep.subr.bf16.mxu0 0
  %1804 = vmatpush1.bf16.msra.mxu0 %v1790
  %1805 = vmatprep.subr.bf16.mxu0 0
  %1806 = vmatpush1.bf16.msra.mxu0 %v1791
  %1807 = vmatprep.subr.bf16.mxu0 0
  %1808 = vmatpush1.bf16.msra.mxu0 0
  %1809 = vmatprep.subr.bf16.mxu0 0
  %1810 = vmatpush1.bf16.msra.mxu0 0
  %1811 = vmatprep.subr.bf16.mxu0 0
  %1812 = vmatpush1.bf16.msra.mxu0 0
  %1813 = vmatprep.subr.bf16.mxu0 0
  %1814 = vmatpush1.bf16.msra.mxu0 0
  %1815 = vmatprep.subr.bf16.mxu0 0
  %1816 = vmatpush1.bf16.msra.mxu0 0
  %1817 = vmatprep.subr.bf16.mxu0 0
  %1818 = vmatpush1.bf16.msra.mxu0 0
  %1819 = vmatprep.subr.bf16.mxu0 0
  %1820 = vmatpush1.bf16.msra.mxu0 0
  %1821 = vmatprep.subr.bf16.mxu0 0
  %1822 = vmatpush1.bf16.msra.mxu0 0
  %1823 = vmatprep.subr.bf16.mxu0 0
  %1824 = vmatpush1.bf16.msra.mxu0 0
  %1825 = vmatprep.subr.bf16.mxu0 0
  %1826 = vmatpush1.bf16.msra.mxu0 0
  %1827 = vmatprep.subr.bf16.mxu0 0
  %1828 = vmatpush1.bf16.msra.mxu0 0
  %1829 = vmatprep.subr.bf16.mxu0 0
  %1830 = vmatpush1.bf16.msra.mxu0 0
  %1831 = vmatprep.mubr.bf16.mxu0 0
  %1832 = vmatmul.mubr.bf16.gmra.mrb[0].mxu0 %v1797
  %v1833 = vpop.f32.mrb[0].mxu0
  %v1834 = vadd.f32 0.0, %v1833
  %v1835 = vpop.f32.mrb[0].mxu0
  %v1836 = vpop.f32.mrb[0].mxu0
  %v1837 = vadd.f32 0.0, %v1836
  %v1838 = vpop.f32.mrb[0].mxu0
  %1839 = vdwg.mxu0
  %v1840 = vsel %vm294, %v1834, 0.0
  %v1841 = vsel %vm294, %v1837, 0.0
  %v1842 = vadd.f32 %v1840, %v1841
  %v1843 = vrot.slane %v1842, 4
  %v1844 = vadd.f32 %v1842, %v1843
  %v1845 = vrot.slane %v1844, 2
  %v1846 = vadd.f32 %v1844, %v1845
  %v1847 = vrot.slane %v1846, 1
  %v1848 = vadd.f32 %v1846, %v1847
  %v1849 = vmul.f32 %v1848, 0.0625
  %v1850 = vmul.f32 %v1834, %v1834
  %v1851 = vmul.f32 %v1837, %v1837
  %v1852 = vsel %vm294, %v1850, 0.0
  %v1853 = vsel %vm294, %v1851, 0.0
  %v1854 = vadd.f32 %v1852, %v1853
  %v1855 = vrot.slane %v1854, 4
  %v1856 = vadd.f32 %v1854, %v1855
  %v1857 = vrot.slane %v1856, 2
  %v1858 = vadd.f32 %v1856, %v1857
  %v1859 = vrot.slane %v1858, 1
  %v1860 = vadd.f32 %v1858, %v1859
  %v1861 = vmul.f32 %v1860, 0.0625
  %v1862 = vmul.f32 %v1849, %v1849
  %v1863 = vsub.f32 %v1861, %v1862
  %v1864 = vadd.f32 %v1863, 1e-05
  %v1865 = vrsqrt.pop %v1864
  %v1866 = vmul.f32 %v170, %v1865
  %v1867 = vmul.f32 %v1849, %v1866
  %v1869 = vrot.slane %v1867, 7
  %v1871 = vsub.f32 %v170, %v1869
  %v1872 = vlaneseq
  %v1873 = vshrl.u32 %v1872, 7
  %v1874 = vsub.s32 4, %v1873
  %v1875 = vrot.slane %v1866, %v1874
  %v1876 = vmul.f32 %v1834, %v1875
  %v1877 = vmul.f32 %v1837, %v1875
  %v1878 = vlaneseq
  %v1879 = vshrl.u32 %v1878, 7
  %v1880 = vsub.s32 5, %v1879
  %v1881 = vrot.slane %v1871, %v1880
  %v1882 = vadd.f32 %v1876, %v1881
  %v1883 = vadd.f32 %v1877, %v1881
  %v1884 = vmax.f32 %v1882, 0.0
  %v1885 = vmax.f32 %v1883, 0.0
  %1886 = vst.msk [vmem:[%s6] sm:$0xff] %vm294, %v1884
  %1887 = vst.msk [vmem:[%s6 + $0x8] sm:$0xff] %vm294, %v1885
  %1888 = vst.msk [vmem:[%s6 + $0x10] sm:$0xff] %vm294, %v1758
  %1889 = vst.msk [vmem:[%s6 + $0x18] sm:$0xff] %vm294, %v1759
  %1890 = vst.msk [vmem:[%s6 + $0x20] sm:$0x3f] %vm1644, %v1760
  // Predicated region
  $region26: #{conv_layer_forward.1} parent=0 // pred_check
    _
  $region27: #{conv_layer_forward.1} parent=0 // pred_check_branch
    %1892 = sbr.rel (0) target = $region29
  $region28: #{conv_layer_forward.1} parent=0 // pred_region
    _
  $region29: #{conv_layer_forward.1} parent=0 // pred_fallthru
    _
  // Predicated region
  $region30: #{conv_layer_forward.1} parent=0 // pred_check
    _
  $region31: #{conv_layer_forward.1} parent=0 // pred_check_branch
    %1894 = sbr.rel (0) target = $region33
  $region32: #{conv_layer_forward.1} parent=0 // pred_region
    _
  $region33: #{conv_layer_forward.1} parent=0 // pred_fallthru
    _

</llo_original>
